<compile_context>
chip_gen: v6e
topology: v6e:2x2x1
jax: 0.10.0
libtpu: 0.0.40
codegen_flags: <defaults>
</compile_context>

<pallas_src>
import functools

import jax
import jax.numpy as jnp
from jax.experimental import pallas as pl
from jax.experimental.pallas import tpu as pltpu


# ----------------------------- Pallas kernel --------------------------------

def _decoder_kernel(num_blocks, *refs):
    """Fused Decoder forward for one batch tile.

    refs layout (all VMEM tiles):
      [0:num_blocks]                     skip refs (already in reversed order)
      [num_blocks]                       x ref
      [num_blocks+1]                     t ref
      [num_blocks+2 : +6*num_blocks]     per block: (W1, b1, Wt, bt, W2, b2)
      [-1]                               output ref
    """
    skip_refs = refs[:num_blocks]
    x_ref = refs[num_blocks]
    t_ref = refs[num_blocks + 1]
    param_refs = refs[num_blocks + 2: num_blocks + 2 + 6 * num_blocks]
    o_ref = refs[-1]

    # t is loaded & cast once and reused by every block's temb_proj matmul.
    t_bf = t_ref[...].astype(jnp.bfloat16)

    x = x_ref[...]  # f32 activation carried between blocks (never leaves VMEM)
    for b in range(num_blocks):
        w1_ref, b1_ref, wt_ref, bt_ref, w2_ref, b2_ref = param_refs[6 * b: 6 * b + 6]

        # layer1: single K = 2*d_in matmul on concat(skip, x), bias, ReLU.
        # Cast both operands to bf16 *before* the lane-concat (half the bytes
        # moved by the concat) -- bitwise-identical result to concat-then-cast.
        xc = jnp.concatenate(
            [skip_refs[b][...].astype(jnp.bfloat16), x.astype(jnp.bfloat16)],
            axis=1)
        h = jnp.dot(xc, w1_ref[...], preferred_element_type=jnp.float32)
        h = jnp.maximum(h + b1_ref[...], 0.0)

        # temb_proj: Linear + ReLU, added to h (f32 elementwise on the VPU).
        tp = jnp.dot(t_bf, wt_ref[...], preferred_element_type=jnp.float32)
        h = h + jnp.maximum(tp + bt_ref[...], 0.0)

        # layer2: Linear + ReLU.
        y = jnp.dot(h.astype(jnp.bfloat16), w2_ref[...],
                    preferred_element_type=jnp.float32)
        x = jnp.maximum(y + b2_ref[...], 0.0)

    o_ref[...] = x.astype(o_ref.dtype)


def decoder_forward(skip_connections, x, t, block_params, *, tb=128):
    """Whole Decoder in one pallas_call, gridded over the batch dimension."""
    num_blocks = len(block_params)
    batch = x.shape[0]
    out_dim = block_params[-1][4].shape[1]     # W2 of the last block -> out dim

    tb = min(tb, batch)
    assert batch % tb == 0, "batch must be a multiple of the batch tile"
    assert tb == batch or tb % 8 == 0, "batch tile must be sublane-aligned"
    grid = (pl.cdiv(batch, tb),)

    def act_spec(d):           # batch-tiled activation
        return pl.BlockSpec((tb, d), lambda i: (i, 0))

    def w_spec(shape):         # weights/biases stay VMEM-resident (constant map)
        return pl.BlockSpec(shape, lambda i: (0, 0))

    inputs, in_specs = [], []
    for s in reversed(skip_connections):       # reversed() as in Decoder.forward
        inputs.append(s)
        in_specs.append(act_spec(s.shape[1]))
    inputs.append(x)
    in_specs.append(act_spec(x.shape[1]))
    inputs.append(t)
    in_specs.append(act_spec(t.shape[1]))
    for params in block_params:
        for p in params:
            inputs.append(p)
            in_specs.append(w_spec(p.shape))

    return pl.pallas_call(
        functools.partial(_decoder_kernel, num_blocks),
        out_shape=jax.ShapeDtypeStruct((batch, out_dim), jnp.float32),
        grid=grid,
        in_specs=in_specs,
        out_specs=pl.BlockSpec((tb, out_dim), lambda i: (i, 0)),
        compiler_params=pltpu.CompilerParams(
            dimension_semantics=("parallel",)),
    )(*inputs)


# jit the whole decoder: one XLA dispatch for the full forward pass.
decoder_forward_jit = jax.jit(decoder_forward, static_argnames=("tb",))


# ----------------------------- Parameter setup -------------------------------

def _linear_params(key, in_dim, out_dim):
    """Deterministic PyTorch-like Linear init: U(-1/sqrt(in), 1/sqrt(in))."""
    kw, kb = jax.random.split(key)
    bound = 1.0 / jnp.sqrt(jnp.float32(in_dim))
    w = jax.random.uniform(kw, (in_dim, out_dim), jnp.float32, -bound, bound)
    b = jax.random.uniform(kb, (1, out_dim), jnp.float32, -bound, bound)
    return w, b


def make_decoder_params(key, encoder_dim, embed_dim):
    """Params for Decoder(config, Continuous): one (W1,b1,Wt,bt,W2,b2) per block.

    Weights are stored in bf16 (MXU-native, halves weight DMA); biases in f32.
    """
    decoder_dim = list(reversed(encoder_dim))
    temb_dim = embed_dim * 4
    blocks = []
    for i in range(len(decoder_dim) - 1):
        d_in, d_out = decoder_dim[i], decoder_dim[i + 1]
        key, k1, k2, k3 = jax.random.split(key, 4)
        w1, b1 = _linear_params(k1, 2 * d_in, d_in)     # layer1 (fan-in = 2*d_in)
        wt, bt = _linear_params(k2, temb_dim, d_in)     # temb_proj
        w2, b2 = _linear_params(k3, d_in, d_out)        # layer2
        blocks.append((w1.astype(jnp.bfloat16), b1,
                       wt.astype(jnp.bfloat16), bt,
                       w2.astype(jnp.bfloat16), b2))
    return blocks


# ----------------------------- Reference (pure JAX, f32) ----------------------

def _decoder_ref(skip_connections, x, t, block_params):
    relu = lambda a: jnp.maximum(a, 0.0)
    f32 = jnp.float32
    for skip, (w1, b1, wt, bt, w2, b2) in zip(reversed(skip_connections),
                                              block_params):
        xc = jnp.concatenate([skip, x], axis=1)
        h = relu(xc @ w1.astype(f32) + b1)
        h = h + relu(t @ wt.astype(f32) + bt)
        x = relu(h @ w2.astype(f32) + b2)
    return x


# ----------------------------- Main ------------------------------------------

if __name__ == "__main__":
    # config: Cont_encoder_dim=[16, 32, 64], embed_dim_Cont=8, activation='relu'
    encoder_dim = [16, 32, 64]          # -> decoder_dim = [64, 32, 16], 2 blocks
    embed_dim = 8                       # temb dim = embed_dim * 4 = 32
    batch = 256                         # batch grid: 2 tiles of 128 rows

    key = jax.random.PRNGKey(0)
    kp, ks1, ks2, kx, kt = jax.random.split(key, 5)

    block_params = make_decoder_params(kp, encoder_dim, embed_dim)

    # skip_connections as produced by the encoder (reversed() in forward pairs
    # the deepest skip (dim 64) with the first decoding block).
    skip_connections = [
        jax.random.normal(ks1, (batch, 32), jnp.float32),
        jax.random.normal(ks2, (batch, 64), jnp.float32),
    ]
    x = jax.random.normal(kx, (batch, 64), jnp.float32)
    t = jax.random.normal(kt, (batch, embed_dim * 4), jnp.float32)

    out = decoder_forward_jit(skip_connections, x, t, block_params)
    out = jax.block_until_ready(out)

    ref = _decoder_ref(skip_connections, x, t, block_params)
    assert out.shape == (batch, encoder_dim[0])  # (256, 16)
    # bf16 matmul operands (f32 accumulation) -> looser tolerance vs f32 ref.
    assert jnp.allclose(out, ref, atol=2e-2, rtol=2e-2), "mismatch vs reference"

    print("KERNEL_OK")
</pallas_src>

<mosaic_0001>
module attributes {stable_mosaic.version = 11 : i64} {
  func.func @_decoder_kernel(%arg0: i32, %arg1: memref<128x64xf32, #tpu.memory_space<vmem>>, %arg2: memref<128x32xf32, #tpu.memory_space<vmem>>, %arg3: memref<128x64xf32, #tpu.memory_space<vmem>>, %arg4: memref<128x32xf32, #tpu.memory_space<vmem>>, %arg5: memref<128x64xbf16, #tpu.memory_space<vmem>>, %arg6: memref<1x64xf32, #tpu.memory_space<vmem>>, %arg7: memref<32x64xbf16, #tpu.memory_space<vmem>>, %arg8: memref<1x64xf32, #tpu.memory_space<vmem>>, %arg9: memref<64x32xbf16, #tpu.memory_space<vmem>>, %arg10: memref<1x32xf32, #tpu.memory_space<vmem>>, %arg11: memref<64x32xbf16, #tpu.memory_space<vmem>>, %arg12: memref<1x32xf32, #tpu.memory_space<vmem>>, %arg13: memref<32x32xbf16, #tpu.memory_space<vmem>>, %arg14: memref<1x32xf32, #tpu.memory_space<vmem>>, %arg15: memref<32x16xbf16, #tpu.memory_space<vmem>>, %arg16: memref<1x16xf32, #tpu.memory_space<vmem>>, %arg17: memref<128x16xf32, #tpu.memory_space<vmem>>) attributes {dimension_semantics = [#tpu.dimension_semantics<parallel>], iteration_bounds = array<i64: 2>, scalar_prefetch = 0 : i64, scratch_operands = 0 : i64, tpu.core_type = #tpu.core_type<tc>, window_params = [{transform_indices = @transform_0, window_bounds = array<i64: 128, 64>}, {transform_indices = @transform_1, window_bounds = array<i64: 128, 32>}, {transform_indices = @transform_2, window_bounds = array<i64: 128, 64>}, {transform_indices = @transform_3, window_bounds = array<i64: 128, 32>}, {pipeline_mode = #tpu.pipeline_mode<synchronous>, transform_indices = @transform_4, window_bounds = array<i64: 128, 64>}, {pipeline_mode = #tpu.pipeline_mode<synchronous>, transform_indices = @transform_5, window_bounds = array<i64: 1, 64>}, {pipeline_mode = #tpu.pipeline_mode<synchronous>, transform_indices = @transform_6, window_bounds = array<i64: 32, 64>}, {pipeline_mode = #tpu.pipeline_mode<synchronous>, transform_indices = @transform_7, window_bounds = array<i64: 1, 64>}, {pipeline_mode = #tpu.pipeline_mode<synchronous>, transform_indices = @transform_8, window_bounds = array<i64: 64, 32>}, {pipeline_mode = #tpu.pipeline_mode<synchronous>, transform_indices = @transform_9, window_bounds = array<i64: 1, 32>}, {pipeline_mode = #tpu.pipeline_mode<synchronous>, transform_indices = @transform_10, window_bounds = array<i64: 64, 32>}, {pipeline_mode = #tpu.pipeline_mode<synchronous>, transform_indices = @transform_11, window_bounds = array<i64: 1, 32>}, {pipeline_mode = #tpu.pipeline_mode<synchronous>, transform_indices = @transform_12, window_bounds = array<i64: 32, 32>}, {pipeline_mode = #tpu.pipeline_mode<synchronous>, transform_indices = @transform_13, window_bounds = array<i64: 1, 32>}, {pipeline_mode = #tpu.pipeline_mode<synchronous>, transform_indices = @transform_14, window_bounds = array<i64: 32, 16>}, {pipeline_mode = #tpu.pipeline_mode<synchronous>, transform_indices = @transform_15, window_bounds = array<i64: 1, 16>}, {transform_indices = @transform_16, window_bounds = array<i64: 128, 16>}]} {
    %c0 = arith.constant 0 : index
    %c0_0 = arith.constant 0 : index
    %0 = vector.load %arg4[%c0, %c0_0] : memref<128x32xf32, #tpu.memory_space<vmem>>, vector<128x32xf32>
    %1 = arith.truncf %0 : vector<128x32xf32> to vector<128x32xbf16>
    %c0_1 = arith.constant 0 : index
    %c0_2 = arith.constant 0 : index
    %2 = vector.load %arg3[%c0_1, %c0_2] : memref<128x64xf32, #tpu.memory_space<vmem>>, vector<128x64xf32>
    %c0_3 = arith.constant 0 : index
    %c0_4 = arith.constant 0 : index
    %3 = vector.load %arg1[%c0_3, %c0_4] : memref<128x64xf32, #tpu.memory_space<vmem>>, vector<128x64xf32>
    %4 = arith.truncf %3 : vector<128x64xf32> to vector<128x64xbf16>
    %5 = arith.truncf %2 : vector<128x64xf32> to vector<128x64xbf16>
    %6 = tpu.concatenate %4, %5 in 1 : vector<128x64xbf16>, vector<128x64xbf16> -> vector<128x128xbf16>
    %c0_5 = arith.constant 0 : index
    %c0_6 = arith.constant 0 : index
    %7 = vector.load %arg5[%c0_5, %c0_6] : memref<128x64xbf16, #tpu.memory_space<vmem>>, vector<128x64xbf16>
    %cst = arith.constant dense<0.000000e+00> : vector<128x64xf32>
    %8 = tpu.matmul %6, %7, %cst {dimension_numbers = #tpu.dot_dimension_numbers<[1], [0], [0], [1], [0, 0, 1, 1], [], []>} : vector<128x128xbf16>, vector<128x64xbf16>, vector<128x64xf32> -> vector<128x64xf32>
    %c0_7 = arith.constant 0 : index
    %c0_8 = arith.constant 0 : index
    %9 = vector.load %arg6[%c0_7, %c0_8] : memref<1x64xf32, #tpu.memory_space<vmem>>, vector<1x64xf32>
    %10 = vector.broadcast %9 : vector<1x64xf32> to vector<128x64xf32>
    %11 = arith.addf %8, %10 : vector<128x64xf32>
    %cst_9 = arith.constant 0.000000e+00 : f32
    %12 = vector.broadcast %cst_9 : f32 to vector<128x64xf32>
    %13 = arith.maximumf %11, %12 : vector<128x64xf32>
    %c0_10 = arith.constant 0 : index
    %c0_11 = arith.constant 0 : index
    %14 = vector.load %arg7[%c0_10, %c0_11] : memref<32x64xbf16, #tpu.memory_space<vmem>>, vector<32x64xbf16>
    %cst_12 = arith.constant dense<0.000000e+00> : vector<128x64xf32>
    %15 = tpu.matmul %1, %14, %cst_12 {dimension_numbers = #tpu.dot_dimension_numbers<[1], [0], [0], [1], [0, 0, 1, 1], [], []>} : vector<128x32xbf16>, vector<32x64xbf16>, vector<128x64xf32> -> vector<128x64xf32>
    %c0_13 = arith.constant 0 : index
    %c0_14 = arith.constant 0 : index
    %16 = vector.load %arg8[%c0_13, %c0_14] : memref<1x64xf32, #tpu.memory_space<vmem>>, vector<1x64xf32>
    %17 = vector.broadcast %16 : vector<1x64xf32> to vector<128x64xf32>
    %18 = arith.addf %15, %17 : vector<128x64xf32>
    %cst_15 = arith.constant 0.000000e+00 : f32
    %19 = vector.broadcast %cst_15 : f32 to vector<128x64xf32>
    %20 = arith.maximumf %18, %19 : vector<128x64xf32>
    %21 = arith.addf %13, %20 : vector<128x64xf32>
    %22 = arith.truncf %21 : vector<128x64xf32> to vector<128x64xbf16>
    %c0_16 = arith.constant 0 : index
    %c0_17 = arith.constant 0 : index
    %23 = vector.load %arg9[%c0_16, %c0_17] : memref<64x32xbf16, #tpu.memory_space<vmem>>, vector<64x32xbf16>
    %cst_18 = arith.constant dense<0.000000e+00> : vector<128x32xf32>
    %24 = tpu.matmul %22, %23, %cst_18 {dimension_numbers = #tpu.dot_dimension_numbers<[1], [0], [0], [1], [0, 0, 1, 1], [], []>} : vector<128x64xbf16>, vector<64x32xbf16>, vector<128x32xf32> -> vector<128x32xf32>
    %c0_19 = arith.constant 0 : index
    %c0_20 = arith.constant 0 : index
    %25 = vector.load %arg10[%c0_19, %c0_20] : memref<1x32xf32, #tpu.memory_space<vmem>>, vector<1x32xf32>
    %26 = vector.broadcast %25 : vector<1x32xf32> to vector<128x32xf32>
    %27 = arith.addf %24, %26 : vector<128x32xf32>
    %cst_21 = arith.constant 0.000000e+00 : f32
    %28 = vector.broadcast %cst_21 : f32 to vector<128x32xf32>
    %29 = arith.maximumf %27, %28 : vector<128x32xf32>
    %c0_22 = arith.constant 0 : index
    %c0_23 = arith.constant 0 : index
    %30 = vector.load %arg2[%c0_22, %c0_23] : memref<128x32xf32, #tpu.memory_space<vmem>>, vector<128x32xf32>
    %31 = arith.truncf %30 : vector<128x32xf32> to vector<128x32xbf16>
    %32 = arith.truncf %29 : vector<128x32xf32> to vector<128x32xbf16>
    %33 = tpu.concatenate %31, %32 in 1 : vector<128x32xbf16>, vector<128x32xbf16> -> vector<128x64xbf16>
    %c0_24 = arith.constant 0 : index
    %c0_25 = arith.constant 0 : index
    %34 = vector.load %arg11[%c0_24, %c0_25] : memref<64x32xbf16, #tpu.memory_space<vmem>>, vector<64x32xbf16>
    %cst_26 = arith.constant dense<0.000000e+00> : vector<128x32xf32>
    %35 = tpu.matmul %33, %34, %cst_26 {dimension_numbers = #tpu.dot_dimension_numbers<[1], [0], [0], [1], [0, 0, 1, 1], [], []>} : vector<128x64xbf16>, vector<64x32xbf16>, vector<128x32xf32> -> vector<128x32xf32>
    %c0_27 = arith.constant 0 : index
    %c0_28 = arith.constant 0 : index
    %36 = vector.load %arg12[%c0_27, %c0_28] : memref<1x32xf32, #tpu.memory_space<vmem>>, vector<1x32xf32>
    %37 = vector.broadcast %36 : vector<1x32xf32> to vector<128x32xf32>
    %38 = arith.addf %35, %37 : vector<128x32xf32>
    %cst_29 = arith.constant 0.000000e+00 : f32
    %39 = vector.broadcast %cst_29 : f32 to vector<128x32xf32>
    %40 = arith.maximumf %38, %39 : vector<128x32xf32>
    %c0_30 = arith.constant 0 : index
    %c0_31 = arith.constant 0 : index
    %41 = vector.load %arg13[%c0_30, %c0_31] : memref<32x32xbf16, #tpu.memory_space<vmem>>, vector<32x32xbf16>
    %cst_32 = arith.constant dense<0.000000e+00> : vector<128x32xf32>
    %42 = tpu.matmul %1, %41, %cst_32 {dimension_numbers = #tpu.dot_dimension_numbers<[1], [0], [0], [1], [0, 0, 1, 1], [], []>} : vector<128x32xbf16>, vector<32x32xbf16>, vector<128x32xf32> -> vector<128x32xf32>
    %c0_33 = arith.constant 0 : index
    %c0_34 = arith.constant 0 : index
    %43 = vector.load %arg14[%c0_33, %c0_34] : memref<1x32xf32, #tpu.memory_space<vmem>>, vector<1x32xf32>
    %44 = vector.broadcast %43 : vector<1x32xf32> to vector<128x32xf32>
    %45 = arith.addf %42, %44 : vector<128x32xf32>
    %cst_35 = arith.constant 0.000000e+00 : f32
    %46 = vector.broadcast %cst_35 : f32 to vector<128x32xf32>
    %47 = arith.maximumf %45, %46 : vector<128x32xf32>
    %48 = arith.addf %40, %47 : vector<128x32xf32>
    %49 = arith.truncf %48 : vector<128x32xf32> to vector<128x32xbf16>
    %c0_36 = arith.constant 0 : index
    %c0_37 = arith.constant 0 : index
    %50 = vector.load %arg15[%c0_36, %c0_37] : memref<32x16xbf16, #tpu.memory_space<vmem>>, vector<32x16xbf16>
    %cst_38 = arith.constant dense<0.000000e+00> : vector<128x16xf32>
    %51 = tpu.matmul %49, %50, %cst_38 {dimension_numbers = #tpu.dot_dimension_numbers<[1], [0], [0], [1], [0, 0, 1, 1], [], []>} : vector<128x32xbf16>, vector<32x16xbf16>, vector<128x16xf32> -> vector<128x16xf32>
    %c0_39 = arith.constant 0 : index
    %c0_40 = arith.constant 0 : index
    %52 = vector.load %arg16[%c0_39, %c0_40] : memref<1x16xf32, #tpu.memory_space<vmem>>, vector<1x16xf32>
    %53 = vector.broadcast %52 : vector<1x16xf32> to vector<128x16xf32>
    %54 = arith.addf %51, %53 : vector<128x16xf32>
    %cst_41 = arith.constant 0.000000e+00 : f32
    %55 = vector.broadcast %cst_41 : f32 to vector<128x16xf32>
    %56 = arith.maximumf %54, %55 : vector<128x16xf32>
    %c0_42 = arith.constant 0 : index
    %c0_43 = arith.constant 0 : index
    %57 = vector.load %arg17[%c0_42, %c0_43] : memref<128x16xf32, #tpu.memory_space<vmem>>, vector<128x16xf32>
    tpu.vector_store %arg17[%c0_42, %c0_43], %56 {strides = array<i32>} : memref<128x16xf32, #tpu.memory_space<vmem>>, vector<128x16xf32>,
    return
  }
  func.func @transform_0(%arg0: i32) -> (i32, i32) {
    %c0_i32 = arith.constant 0 : i32
    %c0_i32_0 = arith.constant 0 : i32
    return %arg0, %c0_i32 : i32, i32
  }
  func.func @transform_1(%arg0: i32) -> (i32, i32) {
    %c0_i32 = arith.constant 0 : i32
    %c0_i32_0 = arith.constant 0 : i32
    return %arg0, %c0_i32 : i32, i32
  }
  func.func @transform_2(%arg0: i32) -> (i32, i32) {
    %c0_i32 = arith.constant 0 : i32
    %c0_i32_0 = arith.constant 0 : i32
    return %arg0, %c0_i32 : i32, i32
  }
  func.func @transform_3(%arg0: i32) -> (i32, i32) {
    %c0_i32 = arith.constant 0 : i32
    %c0_i32_0 = arith.constant 0 : i32
    return %arg0, %c0_i32 : i32, i32
  }
  func.func @transform_4(%arg0: i32) -> (i32, i32) {
    %c0_i32 = arith.constant 0 : i32
    %c0_i32_0 = arith.constant 0 : i32
    %c0_i32_1 = arith.constant 0 : i32
    return %c0_i32, %c0_i32_0 : i32, i32
  }
  func.func @transform_5(%arg0: i32) -> (i32, i32) {
    %c0_i32 = arith.constant 0 : i32
    %c0_i32_0 = arith.constant 0 : i32
    %c0_i32_1 = arith.constant 0 : i32
    return %c0_i32, %c0_i32_0 : i32, i32
  }
  func.func @transform_6(%arg0: i32) -> (i32, i32) {
    %c0_i32 = arith.constant 0 : i32
    %c0_i32_0 = arith.constant 0 : i32
    %c0_i32_1 = arith.constant 0 : i32
    return %c0_i32, %c0_i32_0 : i32, i32
  }
  func.func @transform_7(%arg0: i32) -> (i32, i32) {
    %c0_i32 = arith.constant 0 : i32
    %c0_i32_0 = arith.constant 0 : i32
    %c0_i32_1 = arith.constant 0 : i32
    return %c0_i32, %c0_i32_0 : i32, i32
  }
  func.func @transform_8(%arg0: i32) -> (i32, i32) {
    %c0_i32 = arith.constant 0 : i32
    %c0_i32_0 = arith.constant 0 : i32
    %c0_i32_1 = arith.constant 0 : i32
    return %c0_i32, %c0_i32_0 : i32, i32
  }
  func.func @transform_9(%arg0: i32) -> (i32, i32) {
    %c0_i32 = arith.constant 0 : i32
    %c0_i32_0 = arith.constant 0 : i32
    %c0_i32_1 = arith.constant 0 : i32
    return %c0_i32, %c0_i32_0 : i32, i32
  }
  func.func @transform_10(%arg0: i32) -> (i32, i32) {
    %c0_i32 = arith.constant 0 : i32
    %c0_i32_0 = arith.constant 0 : i32
    %c0_i32_1 = arith.constant 0 : i32
    return %c0_i32, %c0_i32_0 : i32, i32
  }
  func.func @transform_11(%arg0: i32) -> (i32, i32) {
    %c0_i32 = arith.constant 0 : i32
    %c0_i32_0 = arith.constant 0 : i32
    %c0_i32_1 = arith.constant 0 : i32
    return %c0_i32, %c0_i32_0 : i32, i32
  }
  func.func @transform_12(%arg0: i32) -> (i32, i32) {
    %c0_i32 = arith.constant 0 : i32
    %c0_i32_0 = arith.constant 0 : i32
    %c0_i32_1 = arith.constant 0 : i32
    return %c0_i32, %c0_i32_0 : i32, i32
  }
  func.func @transform_13(%arg0: i32) -> (i32, i32) {
    %c0_i32 = arith.constant 0 : i32
    %c0_i32_0 = arith.constant 0 : i32
    %c0_i32_1 = arith.constant 0 : i32
    return %c0_i32, %c0_i32_0 : i32, i32
  }
  func.func @transform_14(%arg0: i32) -> (i32, i32) {
    %c0_i32 = arith.constant 0 : i32
    %c0_i32_0 = arith.constant 0 : i32
    %c0_i32_1 = arith.constant 0 : i32
    return %c0_i32, %c0_i32_0 : i32, i32
  }
  func.func @transform_15(%arg0: i32) -> (i32, i32) {
    %c0_i32 = arith.constant 0 : i32
    %c0_i32_0 = arith.constant 0 : i32
    %c0_i32_1 = arith.constant 0 : i32
    return %c0_i32, %c0_i32_0 : i32, i32
  }
  func.func @transform_16(%arg0: i32) -> (i32, i32) {
    %c0_i32 = arith.constant 0 : i32
    %c0_i32_0 = arith.constant 0 : i32
    return %arg0, %c0_i32 : i32, i32
  }
}

</mosaic_0001>

<llo_original>
// kernel: decoder_forward.1
$region0: #{decoder_forward.1}
  #allocation0 [shape = 'u32[]', space=smem, size = 0x4, offset = 0x4, fixed_abs, tag = 'smem constant byte address 0x4 - core index']
  #allocation1 [shape = 'u32[144,128]{1,0:T(1,128)}', space=vmem, size = 0x12000, scoped, tag = 'internal scratch']
  %s0 = inlined_call_operand.vmem [shape: f32[256,64], index: 0, kind: input, shape index: {}]
  %s1 = inlined_call_operand.vmem [shape: f32[256,32], index: 1, kind: input, shape index: {}]
  %s2 = inlined_call_operand.vmem [shape: f32[256,64], index: 2, kind: input, shape index: {}]
  %s3 = inlined_call_operand.vmem [shape: f32[256,32], index: 3, kind: input, shape index: {}]
  %s4 = inlined_call_operand.vmem [shape: bf16[128,64], index: 4, kind: input, shape index: {}]
  %s5 = inlined_call_operand.vmem [shape: f32[1,64], index: 5, kind: input, shape index: {}]
  %s6 = inlined_call_operand.vmem [shape: bf16[32,64], index: 6, kind: input, shape index: {}]
  %s7 = inlined_call_operand.vmem [shape: f32[1,64], index: 7, kind: input, shape index: {}]
  %s8 = inlined_call_operand.vmem [shape: bf16[64,32], index: 8, kind: input, shape index: {}]
  %s9 = inlined_call_operand.vmem [shape: f32[1,32], index: 9, kind: input, shape index: {}]
  %s10 = inlined_call_operand.vmem [shape: bf16[64,32], index: 10, kind: input, shape index: {}]
  %s11 = inlined_call_operand.vmem [shape: f32[1,32], index: 11, kind: input, shape index: {}]
  %s12 = inlined_call_operand.vmem [shape: bf16[32,32], index: 12, kind: input, shape index: {}]
  %s13 = inlined_call_operand.vmem [shape: f32[1,32], index: 13, kind: input, shape index: {}]
  %s14 = inlined_call_operand.vmem [shape: bf16[32,16], index: 14, kind: input, shape index: {}]
  %s15 = inlined_call_operand.vmem [shape: f32[1,16], index: 15, kind: input, shape index: {}]
  %s16 = inlined_call_operand.vmem [shape: f32[256,16], index: 16, kind: output, shape index: {}]
  %s17 = sld [smem:[#allocation0]]
  $region97: #{decoder_forward.1} parent=0
    _
  %s19 = ssub.s32 1, %s17
  %s20 = scalar_select 0, %s19, %s17
  loop: start=0, step=1, limit=4
  $region2: #{decoder_forward.1} parent=0 // loop_pre_header
    _
  $region3: #{decoder_forward.1} parent=0 // loop_header
    %s22 = sphi 0, %s26
    %p23 = scmp.ge.s32.totalorder %s22, 4
    %s32 = sphi 0, %s34
    %s35 = sphi 0, %s32
    %s36 = sphi 0, %s35
    %s52 = sphi 0, %s36
    %s58 = sphi 0, %s60
    %s61 = sphi 0, %s58
    %s62 = sphi 0, %s61
    %s78 = sphi 0, %s62
    %s84 = sphi 0, %s86
    %s87 = sphi 0, %s84
    %s88 = sphi 0, %s87
    %s104 = sphi 0, %s88
    %s110 = sphi 0, %s112
    %s113 = sphi 0, %s110
    %s114 = sphi 0, %s113
    %s130 = sphi 0, %s114
    %s134 = sphi 0, %s134
    %s136 = sphi 0, %s134
    %s137 = sphi 0, %s136
    %s151 = sphi 0, %s137
    %s155 = sphi 0, %s155
    %s157 = sphi 0, %s155
    %s158 = sphi 0, %s157
    %s172 = sphi 0, %s158
    %s176 = sphi 0, %s176
    %s178 = sphi 0, %s176
    %s179 = sphi 0, %s178
    %s193 = sphi 0, %s179
    %s197 = sphi 0, %s197
    %s199 = sphi 0, %s197
    %s200 = sphi 0, %s199
    %s214 = sphi 0, %s200
    %s218 = sphi 0, %s218
    %s220 = sphi 0, %s218
    %s221 = sphi 0, %s220
    %s235 = sphi 0, %s221
    %s239 = sphi 0, %s239
    %s241 = sphi 0, %s239
    %s242 = sphi 0, %s241
    %s256 = sphi 0, %s242
    %s260 = sphi 0, %s260
    %s262 = sphi 0, %s260
    %s263 = sphi 0, %s262
    %s277 = sphi 0, %s263
    %s281 = sphi 0, %s281
    %s283 = sphi 0, %s281
    %s284 = sphi 0, %s283
    %s298 = sphi 0, %s284
    %s302 = sphi 0, %s302
    %s304 = sphi 0, %s302
    %s305 = sphi 0, %s304
    %s319 = sphi 0, %s305
    %s323 = sphi 0, %s323
    %s325 = sphi 0, %s323
    %s326 = sphi 0, %s325
    %s340 = sphi 0, %s326
    %s344 = sphi 0, %s344
    %s346 = sphi 0, %s344
    %s347 = sphi 0, %s346
    %s361 = sphi 0, %s347
    %s365 = sphi 0, %s365
    %s367 = sphi 0, %s365
    %s368 = sphi 0, %s367
    %s382 = sphi 0, %s368
    %s388 = sphi 0, %s390
    %s391 = sphi 0, %s388
    %s392 = sphi 0, %s391
    %s408 = sphi 0, %s392
  $region4: #{decoder_forward.1} parent=0 // loop_header_branch
    %25 = sbr.rel (%p23) target = $region8
  $region5: #{decoder_forward.1} parent=0 // loop_body
    %s27 = ssub.s32 %s22, 1
    %s28 = ssub.s32 %s22, 2
    %s29 = sadd.s32 %s22, 1
    %s30 = ssub.s32 %s22, %s29
    %p31 = scmp.eq.s32.totalorder %s30, 0
    %s33 = sadd.s32 %s32, 1
    %s34 = scalar_select %p31, %s32, %s33
    %p37 = pneg %p31
    %p38 = scmp.eq.s32.totalorder %s22, 1
    %p39 = por %p37, %p38
    %p40 = scmp.ne.s32.totalorder %s32, %s35
    %p41 = scmp.eq.s32.totalorder %s22, 0
    %p42 = por %p40, %p41
    %p43 = scmp.ne.s32.totalorder %s32, %s35
    %p44 = scmp.eq.s32.totalorder %s27, 1
    %p45 = por %p43, %p44
    %p46 = scmp.ne.s32.totalorder %s35, %s36
    %p47 = scmp.eq.s32.totalorder %s27, 0
    %p48 = por %p46, %p47
    %p49 = scmp.ne.s32.totalorder %s35, %s36
    %p50 = scmp.eq.s32.totalorder %s28, 1
    %p51 = por %p49, %p50
    %p53 = scmp.ne.s32.totalorder %s36, %s52
    %p54 = scmp.eq.s32.totalorder %s28, 0
    %p55 = por %p53, %p54
    %s56 = ssub.s32 %s22, %s29
    %p57 = scmp.eq.s32.totalorder %s56, 0
    %s59 = sadd.s32 %s58, 1
    %s60 = scalar_select %p57, %s58, %s59
    %p63 = pneg %p57
    %p64 = scmp.eq.s32.totalorder %s22, 1
    %p65 = por %p63, %p64
    %p66 = scmp.ne.s32.totalorder %s58, %s61
    %p67 = scmp.eq.s32.totalorder %s22, 0
    %p68 = por %p66, %p67
    %p69 = scmp.ne.s32.totalorder %s58, %s61
    %p70 = scmp.eq.s32.totalorder %s27, 1
    %p71 = por %p69, %p70
    %p72 = scmp.ne.s32.totalorder %s61, %s62
    %p73 = scmp.eq.s32.totalorder %s27, 0
    %p74 = por %p72, %p73
    %p75 = scmp.ne.s32.totalorder %s61, %s62
    %p76 = scmp.eq.s32.totalorder %s28, 1
    %p77 = por %p75, %p76
    %p79 = scmp.ne.s32.totalorder %s62, %s78
    %p80 = scmp.eq.s32.totalorder %s28, 0
    %p81 = por %p79, %p80
    %s82 = ssub.s32 %s22, %s29
    %p83 = scmp.eq.s32.totalorder %s82, 0
    %s85 = sadd.s32 %s84, 1
    %s86 = scalar_select %p83, %s84, %s85
    %p89 = pneg %p83
    %p90 = scmp.eq.s32.totalorder %s22, 1
    %p91 = por %p89, %p90
    %p92 = scmp.ne.s32.totalorder %s84, %s87
    %p93 = scmp.eq.s32.totalorder %s22, 0
    %p94 = por %p92, %p93
    %p95 = scmp.ne.s32.totalorder %s84, %s87
    %p96 = scmp.eq.s32.totalorder %s27, 1
    %p97 = por %p95, %p96
    %p98 = scmp.ne.s32.totalorder %s87, %s88
    %p99 = scmp.eq.s32.totalorder %s27, 0
    %p100 = por %p98, %p99
    %p101 = scmp.ne.s32.totalorder %s87, %s88
    %p102 = scmp.eq.s32.totalorder %s28, 1
    %p103 = por %p101, %p102
    %p105 = scmp.ne.s32.totalorder %s88, %s104
    %p106 = scmp.eq.s32.totalorder %s28, 0
    %p107 = por %p105, %p106
    %s108 = ssub.s32 %s22, %s29
    %p109 = scmp.eq.s32.totalorder %s108, 0
    %s111 = sadd.s32 %s110, 1
    %s112 = scalar_select %p109, %s110, %s111
    %p115 = pneg %p109
    %p116 = scmp.eq.s32.totalorder %s22, 1
    %p117 = por %p115, %p116
    %p118 = scmp.ne.s32.totalorder %s110, %s113
    %p119 = scmp.eq.s32.totalorder %s22, 0
    %p120 = por %p118, %p119
    %p121 = scmp.ne.s32.totalorder %s110, %s113
    %p122 = scmp.eq.s32.totalorder %s27, 1
    %p123 = por %p121, %p122
    %p124 = scmp.ne.s32.totalorder %s113, %s114
    %p125 = scmp.eq.s32.totalorder %s27, 0
    %p126 = por %p124, %p125
    %p127 = scmp.ne.s32.totalorder %s113, %s114
    %p128 = scmp.eq.s32.totalorder %s28, 1
    %p129 = por %p127, %p128
    %p131 = scmp.ne.s32.totalorder %s114, %s130
    %p132 = scmp.eq.s32.totalorder %s28, 0
    %p133 = por %p131, %p132
    %s135 = sadd.s32 %s134, 1
    %p138 = scmp.eq.s32.totalorder %s22, 1
    %p139 = scmp.ne.s32.totalorder %s134, %s136
    %p140 = scmp.eq.s32.totalorder %s22, 0
    %p141 = por %p139, %p140
    %p142 = scmp.ne.s32.totalorder %s134, %s136
    %p143 = scmp.eq.s32.totalorder %s27, 1
    %p144 = por %p142, %p143
    %p145 = scmp.ne.s32.totalorder %s136, %s137
    %p146 = scmp.eq.s32.totalorder %s27, 0
    %p147 = por %p145, %p146
    %p148 = scmp.ne.s32.totalorder %s136, %s137
    %p149 = scmp.eq.s32.totalorder %s28, 1
    %p150 = por %p148, %p149
    %p152 = scmp.ne.s32.totalorder %s137, %s151
    %p153 = scmp.eq.s32.totalorder %s28, 0
    %p154 = por %p152, %p153
    %s156 = sadd.s32 %s155, 1
    %p159 = scmp.eq.s32.totalorder %s22, 1
    %p160 = scmp.ne.s32.totalorder %s155, %s157
    %p161 = scmp.eq.s32.totalorder %s22, 0
    %p162 = por %p160, %p161
    %p163 = scmp.ne.s32.totalorder %s155, %s157
    %p164 = scmp.eq.s32.totalorder %s27, 1
    %p165 = por %p163, %p164
    %p166 = scmp.ne.s32.totalorder %s157, %s158
    %p167 = scmp.eq.s32.totalorder %s27, 0
    %p168 = por %p166, %p167
    %p169 = scmp.ne.s32.totalorder %s157, %s158
    %p170 = scmp.eq.s32.totalorder %s28, 1
    %p171 = por %p169, %p170
    %p173 = scmp.ne.s32.totalorder %s158, %s172
    %p174 = scmp.eq.s32.totalorder %s28, 0
    %p175 = por %p173, %p174
    %s177 = sadd.s32 %s176, 1
    %p180 = scmp.eq.s32.totalorder %s22, 1
    %p181 = scmp.ne.s32.totalorder %s176, %s178
    %p182 = scmp.eq.s32.totalorder %s22, 0
    %p183 = por %p181, %p182
    %p184 = scmp.ne.s32.totalorder %s176, %s178
    %p185 = scmp.eq.s32.totalorder %s27, 1
    %p186 = por %p184, %p185
    %p187 = scmp.ne.s32.totalorder %s178, %s179
    %p188 = scmp.eq.s32.totalorder %s27, 0
    %p189 = por %p187, %p188
    %p190 = scmp.ne.s32.totalorder %s178, %s179
    %p191 = scmp.eq.s32.totalorder %s28, 1
    %p192 = por %p190, %p191
    %p194 = scmp.ne.s32.totalorder %s179, %s193
    %p195 = scmp.eq.s32.totalorder %s28, 0
    %p196 = por %p194, %p195
    %s198 = sadd.s32 %s197, 1
    %p201 = scmp.eq.s32.totalorder %s22, 1
    %p202 = scmp.ne.s32.totalorder %s197, %s199
    %p203 = scmp.eq.s32.totalorder %s22, 0
    %p204 = por %p202, %p203
    %p205 = scmp.ne.s32.totalorder %s197, %s199
    %p206 = scmp.eq.s32.totalorder %s27, 1
    %p207 = por %p205, %p206
    %p208 = scmp.ne.s32.totalorder %s199, %s200
    %p209 = scmp.eq.s32.totalorder %s27, 0
    %p210 = por %p208, %p209
    %p211 = scmp.ne.s32.totalorder %s199, %s200
    %p212 = scmp.eq.s32.totalorder %s28, 1
    %p213 = por %p211, %p212
    %p215 = scmp.ne.s32.totalorder %s200, %s214
    %p216 = scmp.eq.s32.totalorder %s28, 0
    %p217 = por %p215, %p216
    %s219 = sadd.s32 %s218, 1
    %p222 = scmp.eq.s32.totalorder %s22, 1
    %p223 = scmp.ne.s32.totalorder %s218, %s220
    %p224 = scmp.eq.s32.totalorder %s22, 0
    %p225 = por %p223, %p224
    %p226 = scmp.ne.s32.totalorder %s218, %s220
    %p227 = scmp.eq.s32.totalorder %s27, 1
    %p228 = por %p226, %p227
    %p229 = scmp.ne.s32.totalorder %s220, %s221
    %p230 = scmp.eq.s32.totalorder %s27, 0
    %p231 = por %p229, %p230
    %p232 = scmp.ne.s32.totalorder %s220, %s221
    %p233 = scmp.eq.s32.totalorder %s28, 1
    %p234 = por %p232, %p233
    %p236 = scmp.ne.s32.totalorder %s221, %s235
    %p237 = scmp.eq.s32.totalorder %s28, 0
    %p238 = por %p236, %p237
    %s240 = sadd.s32 %s239, 1
    %p243 = scmp.eq.s32.totalorder %s22, 1
    %p244 = scmp.ne.s32.totalorder %s239, %s241
    %p245 = scmp.eq.s32.totalorder %s22, 0
    %p246 = por %p244, %p245
    %p247 = scmp.ne.s32.totalorder %s239, %s241
    %p248 = scmp.eq.s32.totalorder %s27, 1
    %p249 = por %p247, %p248
    %p250 = scmp.ne.s32.totalorder %s241, %s242
    %p251 = scmp.eq.s32.totalorder %s27, 0
    %p252 = por %p250, %p251
    %p253 = scmp.ne.s32.totalorder %s241, %s242
    %p254 = scmp.eq.s32.totalorder %s28, 1
    %p255 = por %p253, %p254
    %p257 = scmp.ne.s32.totalorder %s242, %s256
    %p258 = scmp.eq.s32.totalorder %s28, 0
    %p259 = por %p257, %p258
    %s261 = sadd.s32 %s260, 1
    %p264 = scmp.eq.s32.totalorder %s22, 1
    %p265 = scmp.ne.s32.totalorder %s260, %s262
    %p266 = scmp.eq.s32.totalorder %s22, 0
    %p267 = por %p265, %p266
    %p268 = scmp.ne.s32.totalorder %s260, %s262
    %p269 = scmp.eq.s32.totalorder %s27, 1
    %p270 = por %p268, %p269
    %p271 = scmp.ne.s32.totalorder %s262, %s263
    %p272 = scmp.eq.s32.totalorder %s27, 0
    %p273 = por %p271, %p272
    %p274 = scmp.ne.s32.totalorder %s262, %s263
    %p275 = scmp.eq.s32.totalorder %s28, 1
    %p276 = por %p274, %p275
    %p278 = scmp.ne.s32.totalorder %s263, %s277
    %p279 = scmp.eq.s32.totalorder %s28, 0
    %p280 = por %p278, %p279
    %s282 = sadd.s32 %s281, 1
    %p285 = scmp.eq.s32.totalorder %s22, 1
    %p286 = scmp.ne.s32.totalorder %s281, %s283
    %p287 = scmp.eq.s32.totalorder %s22, 0
    %p288 = por %p286, %p287
    %p289 = scmp.ne.s32.totalorder %s281, %s283
    %p290 = scmp.eq.s32.totalorder %s27, 1
    %p291 = por %p289, %p290
    %p292 = scmp.ne.s32.totalorder %s283, %s284
    %p293 = scmp.eq.s32.totalorder %s27, 0
    %p294 = por %p292, %p293
    %p295 = scmp.ne.s32.totalorder %s283, %s284
    %p296 = scmp.eq.s32.totalorder %s28, 1
    %p297 = por %p295, %p296
    %p299 = scmp.ne.s32.totalorder %s284, %s298
    %p300 = scmp.eq.s32.totalorder %s28, 0
    %p301 = por %p299, %p300
    %s303 = sadd.s32 %s302, 1
    %p306 = scmp.eq.s32.totalorder %s22, 1
    %p307 = scmp.ne.s32.totalorder %s302, %s304
    %p308 = scmp.eq.s32.totalorder %s22, 0
    %p309 = por %p307, %p308
    %p310 = scmp.ne.s32.totalorder %s302, %s304
    %p311 = scmp.eq.s32.totalorder %s27, 1
    %p312 = por %p310, %p311
    %p313 = scmp.ne.s32.totalorder %s304, %s305
    %p314 = scmp.eq.s32.totalorder %s27, 0
    %p315 = por %p313, %p314
    %p316 = scmp.ne.s32.totalorder %s304, %s305
    %p317 = scmp.eq.s32.totalorder %s28, 1
    %p318 = por %p316, %p317
    %p320 = scmp.ne.s32.totalorder %s305, %s319
    %p321 = scmp.eq.s32.totalorder %s28, 0
    %p322 = por %p320, %p321
    %s324 = sadd.s32 %s323, 1
    %p327 = scmp.eq.s32.totalorder %s22, 1
    %p328 = scmp.ne.s32.totalorder %s323, %s325
    %p329 = scmp.eq.s32.totalorder %s22, 0
    %p330 = por %p328, %p329
    %p331 = scmp.ne.s32.totalorder %s323, %s325
    %p332 = scmp.eq.s32.totalorder %s27, 1
    %p333 = por %p331, %p332
    %p334 = scmp.ne.s32.totalorder %s325, %s326
    %p335 = scmp.eq.s32.totalorder %s27, 0
    %p336 = por %p334, %p335
    %p337 = scmp.ne.s32.totalorder %s325, %s326
    %p338 = scmp.eq.s32.totalorder %s28, 1
    %p339 = por %p337, %p338
    %p341 = scmp.ne.s32.totalorder %s326, %s340
    %p342 = scmp.eq.s32.totalorder %s28, 0
    %p343 = por %p341, %p342
    %s345 = sadd.s32 %s344, 1
    %p348 = scmp.eq.s32.totalorder %s22, 1
    %p349 = scmp.ne.s32.totalorder %s344, %s346
    %p350 = scmp.eq.s32.totalorder %s22, 0
    %p351 = por %p349, %p350
    %p352 = scmp.ne.s32.totalorder %s344, %s346
    %p353 = scmp.eq.s32.totalorder %s27, 1
    %p354 = por %p352, %p353
    %p355 = scmp.ne.s32.totalorder %s346, %s347
    %p356 = scmp.eq.s32.totalorder %s27, 0
    %p357 = por %p355, %p356
    %p358 = scmp.ne.s32.totalorder %s346, %s347
    %p359 = scmp.eq.s32.totalorder %s28, 1
    %p360 = por %p358, %p359
    %p362 = scmp.ne.s32.totalorder %s347, %s361
    %p363 = scmp.eq.s32.totalorder %s28, 0
    %p364 = por %p362, %p363
    %s366 = sadd.s32 %s365, 1
    %p369 = scmp.eq.s32.totalorder %s22, 1
    %p370 = scmp.ne.s32.totalorder %s365, %s367
    %p371 = scmp.eq.s32.totalorder %s22, 0
    %p372 = por %p370, %p371
    %p373 = scmp.ne.s32.totalorder %s365, %s367
    %p374 = scmp.eq.s32.totalorder %s27, 1
    %p375 = por %p373, %p374
    %p376 = scmp.ne.s32.totalorder %s367, %s368
    %p377 = scmp.eq.s32.totalorder %s27, 0
    %p378 = por %p376, %p377
    %p379 = scmp.ne.s32.totalorder %s367, %s368
    %p380 = scmp.eq.s32.totalorder %s28, 1
    %p381 = por %p379, %p380
    %p383 = scmp.ne.s32.totalorder %s368, %s382
    %p384 = scmp.eq.s32.totalorder %s28, 0
    %p385 = por %p383, %p384
    %s386 = ssub.s32 %s22, %s29
    %p387 = scmp.eq.s32.totalorder %s386, 0
    %s389 = sadd.s32 %s388, 1
    %s390 = scalar_select %p387, %s388, %s389
    %p393 = pneg %p387
    %p394 = scmp.eq.s32.totalorder %s22, 1
    %p395 = por %p393, %p394
    %p396 = scmp.ne.s32.totalorder %s388, %s391
    %p397 = scmp.eq.s32.totalorder %s22, 0
    %p398 = por %p396, %p397
    %p399 = scmp.ne.s32.totalorder %s388, %s391
    %p400 = scmp.eq.s32.totalorder %s27, 1
    %p401 = por %p399, %p400
    %p402 = scmp.ne.s32.totalorder %s391, %s392
    %p403 = scmp.eq.s32.totalorder %s27, 0
    %p404 = por %p402, %p403
    %p405 = scmp.ne.s32.totalorder %s391, %s392
    %p406 = scmp.eq.s32.totalorder %s28, 1
    %p407 = por %p405, %p406
    %p409 = scmp.ne.s32.totalorder %s392, %s408
    %p410 = scmp.eq.s32.totalorder %s28, 0
    %p411 = por %p409, %p410
    %p412 = scmp.le.s32.totalorder 1, %s22
    %p413 = scmp.lt.s32.totalorder %s22, 3
    %p414 = pnand %p412, %p413
    %p415 = pneg %p414
    // Predicated region
    $region9: #{decoder_forward.1} parent=5 // pred_check
      _
    $region10: #{decoder_forward.1} parent=5 // pred_check_branch
      %417 = sbr.rel (%p414) target = $region12
    $region11: #{decoder_forward.1} parent=5 // pred_region
      %s418 = ssub.s32 %s22, 1
      // Predicated region
      $region13: #{decoder_forward.1} parent=11 // pred_check
        %p419 = pneg %p147
      $region14: #{decoder_forward.1} parent=11 // pred_check_branch
        %421 = sbr.rel (%p419) target = $region16
      $region15: #{decoder_forward.1} parent=11 // pred_region
        _
      $region16: #{decoder_forward.1} parent=11 // pred_fallthru
        _
      // Predicated region
      $region17: #{decoder_forward.1} parent=11 // pred_check
        %p422 = pneg %p168
      $region18: #{decoder_forward.1} parent=11 // pred_check_branch
        %424 = sbr.rel (%p422) target = $region20
      $region19: #{decoder_forward.1} parent=11 // pred_region
        _
      $region20: #{decoder_forward.1} parent=11 // pred_fallthru
        _
      // Predicated region
      $region21: #{decoder_forward.1} parent=11 // pred_check
        %p425 = pneg %p189
      $region22: #{decoder_forward.1} parent=11 // pred_check_branch
        %427 = sbr.rel (%p425) target = $region24
      $region23: #{decoder_forward.1} parent=11 // pred_region
        _
      $region24: #{decoder_forward.1} parent=11 // pred_fallthru
        _
      // Predicated region
      $region25: #{decoder_forward.1} parent=11 // pred_check
        %p428 = pneg %p210
      $region26: #{decoder_forward.1} parent=11 // pred_check_branch
        %430 = sbr.rel (%p428) target = $region28
      $region27: #{decoder_forward.1} parent=11 // pred_region
        _
      $region28: #{decoder_forward.1} parent=11 // pred_fallthru
        _
      // Predicated region
      $region29: #{decoder_forward.1} parent=11 // pred_check
        %p431 = pneg %p231
      $region30: #{decoder_forward.1} parent=11 // pred_check_branch
        %433 = sbr.rel (%p431) target = $region32
      $region31: #{decoder_forward.1} parent=11 // pred_region
        _
      $region32: #{decoder_forward.1} parent=11 // pred_fallthru
        _
      // Predicated region
      $region33: #{decoder_forward.1} parent=11 // pred_check
        %p434 = pneg %p252
      $region34: #{decoder_forward.1} parent=11 // pred_check_branch
        %436 = sbr.rel (%p434) target = $region36
      $region35: #{decoder_forward.1} parent=11 // pred_region
        _
      $region36: #{decoder_forward.1} parent=11 // pred_fallthru
        _
      // Predicated region
      $region37: #{decoder_forward.1} parent=11 // pred_check
        %p437 = pneg %p273
      $region38: #{decoder_forward.1} parent=11 // pred_check_branch
        %439 = sbr.rel (%p437) target = $region40
      $region39: #{decoder_forward.1} parent=11 // pred_region
        _
      $region40: #{decoder_forward.1} parent=11 // pred_fallthru
        _
      // Predicated region
      $region41: #{decoder_forward.1} parent=11 // pred_check
        %p440 = pneg %p294
      $region42: #{decoder_forward.1} parent=11 // pred_check_branch
        %442 = sbr.rel (%p440) target = $region44
      $region43: #{decoder_forward.1} parent=11 // pred_region
        _
      $region44: #{decoder_forward.1} parent=11 // pred_fallthru
        _
      // Predicated region
      $region45: #{decoder_forward.1} parent=11 // pred_check
        %p443 = pneg %p315
      $region46: #{decoder_forward.1} parent=11 // pred_check_branch
        %445 = sbr.rel (%p443) target = $region48
      $region47: #{decoder_forward.1} parent=11 // pred_region
        _
      $region48: #{decoder_forward.1} parent=11 // pred_fallthru
        _
      // Predicated region
      $region49: #{decoder_forward.1} parent=11 // pred_check
        %p446 = pneg %p336
      $region50: #{decoder_forward.1} parent=11 // pred_check_branch
        %448 = sbr.rel (%p446) target = $region52
      $region51: #{decoder_forward.1} parent=11 // pred_region
        _
      $region52: #{decoder_forward.1} parent=11 // pred_fallthru
        _
      // Predicated region
      $region53: #{decoder_forward.1} parent=11 // pred_check
        %p449 = pneg %p357
      $region54: #{decoder_forward.1} parent=11 // pred_check_branch
        %451 = sbr.rel (%p449) target = $region56
      $region55: #{decoder_forward.1} parent=11 // pred_region
        _
      $region56: #{decoder_forward.1} parent=11 // pred_fallthru
        _
      // Predicated region
      $region57: #{decoder_forward.1} parent=11 // pred_check
        %p452 = pneg %p378
      $region58: #{decoder_forward.1} parent=11 // pred_check_branch
        %454 = sbr.rel (%p452) target = $region60
      $region59: #{decoder_forward.1} parent=11 // pred_region
        _
      $region60: #{decoder_forward.1} parent=11 // pred_fallthru
        _
    $region12: #{decoder_forward.1} parent=5 // pred_fallthru
      _
    %p455 = scmp.lt.s32.totalorder %s22, 2
    // Predicated region
    $region61: #{decoder_forward.1} parent=5 // pred_check
      %p456 = pneg %p455
    $region62: #{decoder_forward.1} parent=5 // pred_check_branch
      %458 = sbr.rel (%p456) target = $region64
    $region63: #{decoder_forward.1} parent=5 // pred_region
      // Predicated region
      $region65: #{decoder_forward.1} parent=63 // pred_check
        %p459 = pneg %p42
      $region66: #{decoder_forward.1} parent=63 // pred_check_branch
        %461 = sbr.rel (%p459) target = $region68
      $region67: #{decoder_forward.1} parent=63 // pred_region
        %s462 = smul.u32 16, %s22
        %p463 = scmp.lt.s32.totalorder %s462, 31
        %s464 = scalar_select %p463, %s462, 31
        %s465 = smul.addr %s464, 8
        %s466 = scalar_lea.vmem %s0, %s465
        %s467 = smul.u32 16, %s22
      $region68: #{decoder_forward.1} parent=63 // pred_fallthru
        _
      // Predicated region
      $region69: #{decoder_forward.1} parent=63 // pred_check
        %p468 = pneg %p68
      $region70: #{decoder_forward.1} parent=63 // pred_check_branch
        %470 = sbr.rel (%p468) target = $region72
      $region71: #{decoder_forward.1} parent=63 // pred_region
        %s471 = smul.u32 16, %s22
        %p472 = scmp.lt.s32.totalorder %s471, 31
        %s473 = scalar_select %p472, %s471, 31
        %s474 = smul.addr %s473, 8
        %s475 = scalar_lea.vmem %s1, %s474
        %s476 = smul.u32 16, %s22
      $region72: #{decoder_forward.1} parent=63 // pred_fallthru
        _
      // Predicated region
      $region73: #{decoder_forward.1} parent=63 // pred_check
        %p477 = pneg %p94
      $region74: #{decoder_forward.1} parent=63 // pred_check_branch
        %479 = sbr.rel (%p477) target = $region76
      $region75: #{decoder_forward.1} parent=63 // pred_region
        %s480 = smul.u32 16, %s22
        %p481 = scmp.lt.s32.totalorder %s480, 31
        %s482 = scalar_select %p481, %s480, 31
        %s483 = smul.addr %s482, 8
        %s484 = scalar_lea.vmem %s2, %s483
        %s485 = smul.u32 16, %s22
      $region76: #{decoder_forward.1} parent=63 // pred_fallthru
        _
      // Predicated region
      $region77: #{decoder_forward.1} parent=63 // pred_check
        %p486 = pneg %p120
      $region78: #{decoder_forward.1} parent=63 // pred_check_branch
        %488 = sbr.rel (%p486) target = $region80
      $region79: #{decoder_forward.1} parent=63 // pred_region
        %s489 = smul.u32 16, %s22
        %p490 = scmp.lt.s32.totalorder %s489, 31
        %s491 = scalar_select %p490, %s489, 31
        %s492 = smul.addr %s491, 8
        %s493 = scalar_lea.vmem %s3, %s492
        %s494 = smul.u32 16, %s22
      $region80: #{decoder_forward.1} parent=63 // pred_fallthru
        _
    $region64: #{decoder_forward.1} parent=5 // pred_fallthru
      _
    %p495 = scmp.le.s32.totalorder 1, %s22
    %p496 = scmp.lt.s32.totalorder %s22, 3
    %p497 = pnand %p495, %p496
    %p498 = pneg %p497
    // Predicated region
    $region81: #{decoder_forward.1} parent=5 // pred_check
      _
    $region82: #{decoder_forward.1} parent=5 // pred_check_branch
      %500 = sbr.rel (%p497) target = $region84
    $region83: #{decoder_forward.1} parent=5 // pred_region
      %s501 = ssub.s32 %s22, 1
      %s502 = smul.u32 16, %s27
      %p503 = scmp.lt.s32.totalorder %s502, 31
      %s504 = scalar_select %p503, %s502, 31
      %s505 = smul.addr %s504, 8
      %s506 = scalar_lea.vmem %s0, %s505
      %p507 = pneg %p48
      %p508 = pneg %p45
      %s509 = smul.u32 16, %s27
      %p510 = scmp.lt.s32.totalorder %s509, 31
      %s511 = scalar_select %p510, %s509, 31
      %s512 = smul.addr %s511, 8
      %s513 = scalar_lea.vmem %s1, %s512
      %p514 = pneg %p74
      %p515 = pneg %p71
      %s516 = smul.u32 16, %s27
      %p517 = scmp.lt.s32.totalorder %s516, 31
      %s518 = scalar_select %p517, %s516, 31
      %s519 = smul.addr %s518, 8
      %s520 = scalar_lea.vmem %s2, %s519
      %p521 = pneg %p100
      %p522 = pneg %p97
      %s523 = smul.u32 16, %s27
      %p524 = scmp.lt.s32.totalorder %s523, 31
      %s525 = scalar_select %p524, %s523, 31
      %s526 = smul.addr %s525, 8
      %s527 = scalar_lea.vmem %s3, %s526
      %p528 = pneg %p126
      %p529 = pneg %p123
      %p530 = pneg %p147
      %p531 = pneg %p144
      %p532 = pneg %p168
      %p533 = pneg %p165
      %p534 = pneg %p189
      %p535 = pneg %p186
      %p536 = pneg %p210
      %p537 = pneg %p207
      %p538 = pneg %p231
      %p539 = pneg %p228
      %p540 = pneg %p252
      %p541 = pneg %p249
      %p542 = pneg %p273
      %p543 = pneg %p270
      %p544 = pneg %p294
      %p545 = pneg %p291
      %p546 = pneg %p315
      %p547 = pneg %p312
      %p548 = pneg %p336
      %p549 = pneg %p333
      %p550 = pneg %p357
      %p551 = pneg %p354
      %p552 = pneg %p378
      %p553 = pneg %p375
      %p554 = pneg %p404
      %p555 = pneg %p401
      %s556 = smul.u32 16, %s27
      %p557 = scmp.lt.s32.totalorder %s556, 31
      %s558 = scalar_select %p557, %s556, 31
      %s559 = smul.addr %s558, 8
      %s560 = scalar_lea.vmem %s16, %s559
      %s561 = smul.u32 16, %s27
      %p562 = scmp.lt.s32.totalorder %s561, 31
      %s563 = scalar_select %p562, %s561, 31
      %s564 = smul.addr %s563, 8
      %s565 = scalar_lea.vmem %s0, %s564
      %s566 = smul.u32 16, %s27
      %s567 = smul.u32 16, %s27
      %p568 = scmp.lt.s32.totalorder %s567, 31
      %s569 = scalar_select %p568, %s567, 31
      %s570 = smul.addr %s569, 8
      %s571 = scalar_lea.vmem %s1, %s570
      %s572 = smul.u32 16, %s27
      %s573 = smul.u32 16, %s27
      %p574 = scmp.lt.s32.totalorder %s573, 31
      %s575 = scalar_select %p574, %s573, 31
      %s576 = smul.addr %s575, 8
      %s577 = scalar_lea.vmem %s2, %s576
      %s578 = smul.u32 16, %s27
      %s579 = smul.u32 16, %s27
      %p580 = scmp.lt.s32.totalorder %s579, 31
      %s581 = scalar_select %p580, %s579, 31
      %s582 = smul.addr %s581, 8
      %s583 = scalar_lea.vmem %s3, %s582
      %s584 = smul.u32 16, %s27
      %s585 = smul.u32 16, %s27
      %p586 = scmp.lt.s32.totalorder %s585, 31
      %s587 = scalar_select %p586, %s585, 31
      %s588 = smul.addr %s587, 8
      %s589 = scalar_lea.vmem %s16, %s588
      %s590 = smul.u32 16, %s27
      %v592 = vld [vmem:[%s583] sm:$0xff]
      %v593 = vld [vmem:[%s583 + $0x8] sm:$0xff]
      %v594 = vld [vmem:[%s583 + $0x10] sm:$0xff]
      %v595 = vld [vmem:[%s583 + $0x18] sm:$0xff]
      %v596 = vld [vmem:[%s583 + $0x20] sm:$0xff]
      %v597 = vld [vmem:[%s583 + $0x28] sm:$0xff]
      %v598 = vld [vmem:[%s583 + $0x30] sm:$0xff]
      %v599 = vld [vmem:[%s583 + $0x38] sm:$0xff]
      %v600 = vld [vmem:[%s583 + $0x40] sm:$0xff]
      %v601 = vld [vmem:[%s583 + $0x48] sm:$0xff]
      %v602 = vld [vmem:[%s583 + $0x50] sm:$0xff]
      %v603 = vld [vmem:[%s583 + $0x58] sm:$0xff]
      %v604 = vld [vmem:[%s583 + $0x60] sm:$0xff]
      %v605 = vld [vmem:[%s583 + $0x68] sm:$0xff]
      %v606 = vld [vmem:[%s583 + $0x70] sm:$0xff]
      %v607 = vld [vmem:[%s583 + $0x78] sm:$0xff]
      %v608 = vpack.c.bf16 %v593, %v592
      %v609 = vpack.c.bf16 %v595, %v594
      %v610 = vpack.c.bf16 %v597, %v596
      %v611 = vpack.c.bf16 %v599, %v598
      %v612 = vpack.c.bf16 %v601, %v600
      %v613 = vpack.c.bf16 %v603, %v602
      %v614 = vpack.c.bf16 %v605, %v604
      %v615 = vpack.c.bf16 %v607, %v606
      %v616 = vld [vmem:[%s577] sm:$0xff]
      %v617 = vld [vmem:[%s577 + $0x8] sm:$0xff]
      %v618 = vld [vmem:[%s577 + $0x10] sm:$0xff]
      %v619 = vld [vmem:[%s577 + $0x18] sm:$0xff]
      %v620 = vld [vmem:[%s577 + $0x20] sm:$0xff]
      %v621 = vld [vmem:[%s577 + $0x28] sm:$0xff]
      %v622 = vld [vmem:[%s577 + $0x30] sm:$0xff]
      %v623 = vld [vmem:[%s577 + $0x38] sm:$0xff]
      %v624 = vld [vmem:[%s577 + $0x40] sm:$0xff]
      %v625 = vld [vmem:[%s577 + $0x48] sm:$0xff]
      %v626 = vld [vmem:[%s577 + $0x50] sm:$0xff]
      %v627 = vld [vmem:[%s577 + $0x58] sm:$0xff]
      %v628 = vld [vmem:[%s577 + $0x60] sm:$0xff]
      %v629 = vld [vmem:[%s577 + $0x68] sm:$0xff]
      %v630 = vld [vmem:[%s577 + $0x70] sm:$0xff]
      %v631 = vld [vmem:[%s577 + $0x78] sm:$0xff]
      %v632 = vld [vmem:[%s565] sm:$0xff]
      %v633 = vld [vmem:[%s565 + $0x8] sm:$0xff]
      %v634 = vld [vmem:[%s565 + $0x10] sm:$0xff]
      %v635 = vld [vmem:[%s565 + $0x18] sm:$0xff]
      %v636 = vld [vmem:[%s565 + $0x20] sm:$0xff]
      %v637 = vld [vmem:[%s565 + $0x28] sm:$0xff]
      %v638 = vld [vmem:[%s565 + $0x30] sm:$0xff]
      %v639 = vld [vmem:[%s565 + $0x38] sm:$0xff]
      %v640 = vld [vmem:[%s565 + $0x40] sm:$0xff]
      %v641 = vld [vmem:[%s565 + $0x48] sm:$0xff]
      %v642 = vld [vmem:[%s565 + $0x50] sm:$0xff]
      %v643 = vld [vmem:[%s565 + $0x58] sm:$0xff]
      %v644 = vld [vmem:[%s565 + $0x60] sm:$0xff]
      %v645 = vld [vmem:[%s565 + $0x68] sm:$0xff]
      %v646 = vld [vmem:[%s565 + $0x70] sm:$0xff]
      %v647 = vld [vmem:[%s565 + $0x78] sm:$0xff]
      %v648 = vpack.c.bf16 %v633, %v632
      %v649 = vpack.c.bf16 %v635, %v634
      %v650 = vpack.c.bf16 %v637, %v636
      %v651 = vpack.c.bf16 %v639, %v638
      %v652 = vpack.c.bf16 %v641, %v640
      %v653 = vpack.c.bf16 %v643, %v642
      %v654 = vpack.c.bf16 %v645, %v644
      %v655 = vpack.c.bf16 %v647, %v646
      %v656 = vpack.c.bf16 %v617, %v616
      %v657 = vpack.c.bf16 %v619, %v618
      %v658 = vpack.c.bf16 %v621, %v620
      %v659 = vpack.c.bf16 %v623, %v622
      %v660 = vpack.c.bf16 %v625, %v624
      %v661 = vpack.c.bf16 %v627, %v626
      %v662 = vpack.c.bf16 %v629, %v628
      %v663 = vpack.c.bf16 %v631, %v630
      %672 = vrot.lane.b32.xlu0 %v656, 64
      %v673 = vpop.permute.xlu0 %672
      %674 = vrot.lane.b32.xlu0 %v657, 64
      %v675 = vpop.permute.xlu0 %674
      %676 = vrot.lane.b32.xlu0 %v658, 64
      %v677 = vpop.permute.xlu0 %676
      %678 = vrot.lane.b32.xlu0 %v659, 64
      %v679 = vpop.permute.xlu0 %678
      %680 = vrot.lane.b32.xlu0 %v660, 64
      %v681 = vpop.permute.xlu0 %680
      %682 = vrot.lane.b32.xlu0 %v661, 64
      %v683 = vpop.permute.xlu0 %682
      %684 = vrot.lane.b32.xlu0 %v662, 64
      %v685 = vpop.permute.xlu0 %684
      %686 = vrot.lane.b32.xlu0 %v663, 64
      %v687 = vpop.permute.xlu0 %686
      %vm688 = vcmask 523264
      %v691 = vsel %vm688, %v648, %v673
      %v695 = vsel %vm688, %v649, %v675
      %v699 = vsel %vm688, %v650, %v677
      %v703 = vsel %vm688, %v651, %v679
      %v707 = vsel %vm688, %v652, %v681
      %v711 = vsel %vm688, %v653, %v683
      %v715 = vsel %vm688, %v654, %v685
      %v719 = vsel %vm688, %v655, %v687
      %v721 = vld [vmem:[%s4] sm:$0xf]
      %v722 = vld [vmem:[%s4 + $0x4] sm:$0xf]
      %v723 = vld [vmem:[%s4 + $0x8] sm:$0xf]
      %v724 = vld [vmem:[%s4 + $0xc] sm:$0xf]
      %v725 = vld [vmem:[%s4 + $0x10] sm:$0xf]
      %v726 = vld [vmem:[%s4 + $0x14] sm:$0xf]
      %v727 = vld [vmem:[%s4 + $0x18] sm:$0xf]
      %v728 = vld [vmem:[%s4 + $0x1c] sm:$0xf]
      %v729 = vld [vmem:[%s4 + $0x20] sm:$0xf]
      %v730 = vld [vmem:[%s4 + $0x24] sm:$0xf]
      %v731 = vld [vmem:[%s4 + $0x28] sm:$0xf]
      %v732 = vld [vmem:[%s4 + $0x2c] sm:$0xf]
      %v733 = vld [vmem:[%s4 + $0x30] sm:$0xf]
      %v734 = vld [vmem:[%s4 + $0x34] sm:$0xf]
      %v735 = vld [vmem:[%s4 + $0x38] sm:$0xf]
      %v736 = vld [vmem:[%s4 + $0x3c] sm:$0xf]
      %v737 = vld [vmem:[%s5] sm:$0x1]
      %v739 = vlaneseq
      %v740 = vshrl.u32 %v739, 7
      %v741 = vsub.s32 0, %v740
      %v742 = vrot.slane %v737, %v741
      %v760 = vunpack.c.l.b16 %v721
      %v761 = vunpack.c.l.b16 %v722
      %v762 = vunpack.c.l.b16 %v723
      %v763 = vunpack.c.l.b16 %v724
      %v764 = vunpack.c.l.b16 %v725
      %v765 = vunpack.c.l.b16 %v726
      %v766 = vunpack.c.l.b16 %v727
      %v767 = vunpack.c.l.b16 %v728
      %v768 = vunpack.c.l.b16 %v729
      %v769 = vunpack.c.l.b16 %v730
      %v770 = vunpack.c.l.b16 %v731
      %v771 = vunpack.c.l.b16 %v732
      %v772 = vunpack.c.l.b16 %v733
      %v773 = vunpack.c.l.b16 %v734
      %v774 = vunpack.c.l.b16 %v735
      %v775 = vunpack.c.l.b16 %v736
      %v776 = vpack.c.b16 %v761, %v760
      %v777 = vpack.c.b16 %v763, %v762
      %v778 = vpack.c.b16 %v765, %v764
      %v779 = vpack.c.b16 %v767, %v766
      %v780 = vpack.c.b16 %v769, %v768
      %v781 = vpack.c.b16 %v771, %v770
      %v782 = vpack.c.b16 %v773, %v772
      %v783 = vpack.c.b16 %v775, %v774
      %792 = vmatprep.subr.bf16.mxu0 0
      %793 = vmatpush1.bf16.msra.mxu0 %v783
      %794 = vmatprep.subr.bf16.mxu0 0
      %795 = vmatpush1.bf16.msra.mxu0 %v782
      %796 = vmatprep.subr.bf16.mxu0 0
      %797 = vmatpush1.bf16.msra.mxu0 %v781
      %798 = vmatprep.subr.bf16.mxu0 0
      %799 = vmatpush1.bf16.msra.mxu0 %v780
      %800 = vmatprep.subr.bf16.mxu0 0
      %801 = vmatpush1.bf16.msra.mxu0 %v779
      %802 = vmatprep.subr.bf16.mxu0 0
      %803 = vmatpush1.bf16.msra.mxu0 %v778
      %804 = vmatprep.subr.bf16.mxu0 0
      %805 = vmatpush1.bf16.msra.mxu0 %v777
      %806 = vmatprep.subr.bf16.mxu0 0
      %807 = vmatpush1.bf16.msra.mxu0 %v776
      %808 = vmatprep.subr.bf16.mxu0 0
      %809 = vmatpush2.bf16.msra.mxu0 0
      %810 = vmatprep.subr.bf16.mxu0 0
      %811 = vmatpush2.bf16.msra.mxu0 0
      %812 = vmatprep.subr.bf16.mxu0 0
      %813 = vmatpush2.bf16.msra.mxu0 0
      %814 = vmatprep.subr.bf16.mxu0 0
      %815 = vmatpush2.bf16.msra.mxu0 0
      %816 = vmatprep.subr.bf16.mxu0 0
      %817 = vmatpush2.bf16.msra.mxu0 0
      %818 = vmatprep.subr.bf16.mxu0 0
      %819 = vmatpush2.bf16.msra.mxu0 0
      %820 = vmatprep.subr.bf16.mxu0 0
      %821 = vmatpush2.bf16.msra.mxu0 0
      %822 = vmatprep.subr.bf16.mxu0 0
      %823 = vmatpush2.bf16.msra.mxu0 0
      %824 = vmatprep.mubr.bf16.mxu0 0
      %825 = vmatmul.mubr.bf16.gmra.mxu0 %v691
      %v826 = vpop.f32.mrf.mxu0
      %v827 = vadd.f32 %v742, %v826
      %v828 = vpop.f32.mrf.mxu0
      %v829 = vpop.f32.mrf.mxu0
      %v830 = vadd.f32 %v742, %v829
      %v831 = vpop.f32.mrf.mxu0
      %832 = vmatprep.mubr.bf16.mxu0 0
      %833 = vmatmul.mubr.bf16.gmra.mxu0 %v695
      %v834 = vpop.f32.mrf.mxu0
      %v835 = vadd.f32 %v742, %v834
      %v836 = vpop.f32.mrf.mxu0
      %v837 = vpop.f32.mrf.mxu0
      %v838 = vadd.f32 %v742, %v837
      %v839 = vpop.f32.mrf.mxu0
      %840 = vmatprep.mubr.bf16.mxu0 0
      %841 = vmatmul.mubr.bf16.gmra.mxu0 %v699
      %v842 = vpop.f32.mrf.mxu0
      %v843 = vadd.f32 %v742, %v842
      %v844 = vpop.f32.mrf.mxu0
      %v845 = vpop.f32.mrf.mxu0
      %v846 = vadd.f32 %v742, %v845
      %v847 = vpop.f32.mrf.mxu0
      %848 = vmatprep.mubr.bf16.mxu0 0
      %849 = vmatmul.mubr.bf16.gmra.mxu0 %v703
      %v850 = vpop.f32.mrf.mxu0
      %v851 = vadd.f32 %v742, %v850
      %v852 = vpop.f32.mrf.mxu0
      %v853 = vpop.f32.mrf.mxu0
      %v854 = vadd.f32 %v742, %v853
      %v855 = vpop.f32.mrf.mxu0
      %856 = vmatprep.mubr.bf16.mxu0 0
      %857 = vmatmul.mubr.bf16.gmra.mxu0 %v707
      %v858 = vpop.f32.mrf.mxu0
      %v859 = vadd.f32 %v742, %v858
      %v860 = vpop.f32.mrf.mxu0
      %v861 = vpop.f32.mrf.mxu0
      %v862 = vadd.f32 %v742, %v861
      %v863 = vpop.f32.mrf.mxu0
      %864 = vmatprep.mubr.bf16.mxu0 0
      %865 = vmatmul.mubr.bf16.gmra.mxu0 %v711
      %v866 = vpop.f32.mrf.mxu0
      %v867 = vadd.f32 %v742, %v866
      %v868 = vpop.f32.mrf.mxu0
      %v869 = vpop.f32.mrf.mxu0
      %v870 = vadd.f32 %v742, %v869
      %v871 = vpop.f32.mrf.mxu0
      %872 = vmatprep.mubr.bf16.mxu0 0
      %873 = vmatmul.mubr.bf16.gmra.mxu0 %v715
      %v874 = vpop.f32.mrf.mxu0
      %v875 = vadd.f32 %v742, %v874
      %v876 = vpop.f32.mrf.mxu0
      %v877 = vpop.f32.mrf.mxu0
      %v878 = vadd.f32 %v742, %v877
      %v879 = vpop.f32.mrf.mxu0
      %880 = vmatprep.mubr.bf16.mxu0 0
      %881 = vmatmul.mubr.bf16.gmra.mxu0 %v719
      %v882 = vpop.f32.mrf.mxu0
      %v883 = vadd.f32 %v742, %v882
      %v884 = vpop.f32.mrf.mxu0
      %v885 = vpop.f32.mrf.mxu0
      %v886 = vadd.f32 %v742, %v885
      %v887 = vpop.f32.mrf.mxu0
      %888 = vdwg.mxu0
      %v889 = vmax.f32 %v827, 0.0
      %v890 = vmax.f32 %v830, 0.0
      %v891 = vmax.f32 %v835, 0.0
      %v892 = vmax.f32 %v838, 0.0
      %v893 = vmax.f32 %v843, 0.0
      %v894 = vmax.f32 %v846, 0.0
      %v895 = vmax.f32 %v851, 0.0
      %v896 = vmax.f32 %v854, 0.0
      %v897 = vmax.f32 %v859, 0.0
      %v898 = vmax.f32 %v862, 0.0
      %v899 = vmax.f32 %v867, 0.0
      %v900 = vmax.f32 %v870, 0.0
      %v901 = vmax.f32 %v875, 0.0
      %v902 = vmax.f32 %v878, 0.0
      %v903 = vmax.f32 %v883, 0.0
      %v904 = vmax.f32 %v886, 0.0
      %v905 = vld [vmem:[%s6] sm:$0xf]
      %v906 = vld [vmem:[%s6 + $0x4] sm:$0xf]
      %v907 = vld [vmem:[%s6 + $0x8] sm:$0xf]
      %v908 = vld [vmem:[%s6 + $0xc] sm:$0xf]
      %v909 = vld [vmem:[%s7] sm:$0x1]
      %v911 = vlaneseq
      %v912 = vshrl.u32 %v911, 7
      %v913 = vsub.s32 0, %v912
      %v914 = vrot.slane %v909, %v913
      %v920 = vunpack.c.l.b16 %v905
      %v921 = vunpack.c.l.b16 %v906
      %v922 = vunpack.c.l.b16 %v907
      %v923 = vunpack.c.l.b16 %v908
      %v924 = vpack.c.b16 %v921, %v920
      %v925 = vpack.c.b16 %v923, %v922
      %vm928 = vcmask 261120
      %v930 = vsel %vm928, %v608, 0
      %v933 = vsel %vm928, %v609, 0
      %v936 = vsel %vm928, %v610, 0
      %v939 = vsel %vm928, %v611, 0
      %v942 = vsel %vm928, %v612, 0
      %v945 = vsel %vm928, %v613, 0
      %v948 = vsel %vm928, %v614, 0
      %v951 = vsel %vm928, %v615, 0
      %953 = vmatprep.subr.bf16.mxu0 0
      %954 = vmatpush1.bf16.msra.mxu0 0
      %955 = vmatprep.subr.bf16.mxu0 0
      %956 = vmatpush1.bf16.msra.mxu0 0
      %957 = vmatprep.subr.bf16.mxu0 0
      %958 = vmatpush1.bf16.msra.mxu0 0
      %959 = vmatprep.subr.bf16.mxu0 0
      %960 = vmatpush1.bf16.msra.mxu0 0
      %961 = vmatprep.subr.bf16.mxu0 0
      %962 = vmatpush1.bf16.msra.mxu0 0
      %963 = vmatprep.subr.bf16.mxu0 0
      %964 = vmatpush1.bf16.msra.mxu0 0
      %965 = vmatprep.subr.bf16.mxu0 0
      %966 = vmatpush1.bf16.msra.mxu0 %v925
      %967 = vmatprep.subr.bf16.mxu0 0
      %968 = vmatpush1.bf16.msra.mxu0 %v924
      %969 = vmatprep.subr.bf16.mxu0 0
      %970 = vmatpush2.bf16.msra.mxu0 0
      %971 = vmatprep.subr.bf16.mxu0 0
      %972 = vmatpush2.bf16.msra.mxu0 0
      %973 = vmatprep.subr.bf16.mxu0 0
      %974 = vmatpush2.bf16.msra.mxu0 0
      %975 = vmatprep.subr.bf16.mxu0 0
      %976 = vmatpush2.bf16.msra.mxu0 0
      %977 = vmatprep.subr.bf16.mxu0 0
      %978 = vmatpush2.bf16.msra.mxu0 0
      %979 = vmatprep.subr.bf16.mxu0 0
      %980 = vmatpush2.bf16.msra.mxu0 0
      %981 = vmatprep.subr.bf16.mxu0 0
      %982 = vmatpush2.bf16.msra.mxu0 0
      %983 = vmatprep.subr.bf16.mxu0 0
      %984 = vmatpush2.bf16.msra.mxu0 0
      %985 = vmatprep.mubr.bf16.mxu0 0
      %986 = vmatmul.mubr.bf16.gmra.mxu0 %v930
      %v987 = vpop.f32.mrf.mxu0
      %v988 = vadd.f32 %v914, %v987
      %v989 = vpop.f32.mrf.mxu0
      %v990 = vpop.f32.mrf.mxu0
      %v991 = vadd.f32 %v914, %v990
      %v992 = vpop.f32.mrf.mxu0
      %993 = vmatprep.mubr.bf16.mxu0 0
      %994 = vmatmul.mubr.bf16.gmra.mxu0 %v933
      %v995 = vpop.f32.mrf.mxu0
      %v996 = vadd.f32 %v914, %v995
      %v997 = vpop.f32.mrf.mxu0
      %v998 = vpop.f32.mrf.mxu0
      %v999 = vadd.f32 %v914, %v998
      %v1000 = vpop.f32.mrf.mxu0
      %1001 = vmatprep.mubr.bf16.mxu0 0
      %1002 = vmatmul.mubr.bf16.gmra.mxu0 %v936
      %v1003 = vpop.f32.mrf.mxu0
      %v1004 = vadd.f32 %v914, %v1003
      %v1005 = vpop.f32.mrf.mxu0
      %v1006 = vpop.f32.mrf.mxu0
      %v1007 = vadd.f32 %v914, %v1006
      %v1008 = vpop.f32.mrf.mxu0
      %1009 = vmatprep.mubr.bf16.mxu0 0
      %1010 = vmatmul.mubr.bf16.gmra.mxu0 %v939
      %v1011 = vpop.f32.mrf.mxu0
      %v1012 = vadd.f32 %v914, %v1011
      %v1013 = vpop.f32.mrf.mxu0
      %v1014 = vpop.f32.mrf.mxu0
      %v1015 = vadd.f32 %v914, %v1014
      %v1016 = vpop.f32.mrf.mxu0
      %1017 = vmatprep.mubr.bf16.mxu0 0
      %1018 = vmatmul.mubr.bf16.gmra.mxu0 %v942
      %v1019 = vpop.f32.mrf.mxu0
      %v1020 = vadd.f32 %v914, %v1019
      %v1021 = vpop.f32.mrf.mxu0
      %v1022 = vpop.f32.mrf.mxu0
      %v1023 = vadd.f32 %v914, %v1022
      %v1024 = vpop.f32.mrf.mxu0
      %1025 = vmatprep.mubr.bf16.mxu0 0
      %1026 = vmatmul.mubr.bf16.gmra.mxu0 %v945
      %v1027 = vpop.f32.mrf.mxu0
      %v1028 = vadd.f32 %v914, %v1027
      %v1029 = vpop.f32.mrf.mxu0
      %v1030 = vpop.f32.mrf.mxu0
      %v1031 = vadd.f32 %v914, %v1030
      %v1032 = vpop.f32.mrf.mxu0
      %1033 = vmatprep.mubr.bf16.mxu0 0
      %1034 = vmatmul.mubr.bf16.gmra.mxu0 %v948
      %v1035 = vpop.f32.mrf.mxu0
      %v1036 = vadd.f32 %v914, %v1035
      %v1037 = vpop.f32.mrf.mxu0
      %v1038 = vpop.f32.mrf.mxu0
      %v1039 = vadd.f32 %v914, %v1038
      %v1040 = vpop.f32.mrf.mxu0
      %1041 = vmatprep.mubr.bf16.mxu0 0
      %1042 = vmatmul.mubr.bf16.gmra.mxu0 %v951
      %v1043 = vpop.f32.mrf.mxu0
      %v1044 = vadd.f32 %v914, %v1043
      %v1045 = vpop.f32.mrf.mxu0
      %v1046 = vpop.f32.mrf.mxu0
      %v1047 = vadd.f32 %v914, %v1046
      %v1048 = vpop.f32.mrf.mxu0
      %1049 = vdwg.mxu0
      %v1050 = vmax.f32 %v988, 0.0
      %v1051 = vmax.f32 %v991, 0.0
      %v1052 = vmax.f32 %v996, 0.0
      %v1053 = vmax.f32 %v999, 0.0
      %v1054 = vmax.f32 %v1004, 0.0
      %v1055 = vmax.f32 %v1007, 0.0
      %v1056 = vmax.f32 %v1012, 0.0
      %v1057 = vmax.f32 %v1015, 0.0
      %v1058 = vmax.f32 %v1020, 0.0
      %v1059 = vmax.f32 %v1023, 0.0
      %v1060 = vmax.f32 %v1028, 0.0
      %v1061 = vmax.f32 %v1031, 0.0
      %v1062 = vmax.f32 %v1036, 0.0
      %v1063 = vmax.f32 %v1039, 0.0
      %v1064 = vmax.f32 %v1044, 0.0
      %v1065 = vmax.f32 %v1047, 0.0
      %v1066 = vadd.f32 %v889, %v1050
      %v1067 = vadd.f32 %v890, %v1051
      %v1068 = vadd.f32 %v891, %v1052
      %v1069 = vadd.f32 %v892, %v1053
      %v1070 = vadd.f32 %v893, %v1054
      %v1071 = vadd.f32 %v894, %v1055
      %v1072 = vadd.f32 %v895, %v1056
      %v1073 = vadd.f32 %v896, %v1057
      %v1074 = vadd.f32 %v897, %v1058
      %v1075 = vadd.f32 %v898, %v1059
      %v1076 = vadd.f32 %v899, %v1060
      %v1077 = vadd.f32 %v900, %v1061
      %v1078 = vadd.f32 %v901, %v1062
      %v1079 = vadd.f32 %v902, %v1063
      %v1080 = vadd.f32 %v903, %v1064
      %v1081 = vadd.f32 %v904, %v1065
      %v1082 = vpack.c.bf16 %v1067, %v1066
      %v1083 = vpack.c.bf16 %v1069, %v1068
      %v1084 = vpack.c.bf16 %v1071, %v1070
      %v1085 = vpack.c.bf16 %v1073, %v1072
      %v1086 = vpack.c.bf16 %v1075, %v1074
      %v1087 = vpack.c.bf16 %v1077, %v1076
      %v1088 = vpack.c.bf16 %v1079, %v1078
      %v1089 = vpack.c.bf16 %v1081, %v1080
      %v1090 = vld [vmem:[%s8] sm:$0xf]
      %v1091 = vld [vmem:[%s8 + $0x4] sm:$0xf]
      %v1092 = vld [vmem:[%s8 + $0x8] sm:$0xf]
      %v1093 = vld [vmem:[%s8 + $0xc] sm:$0xf]
      %v1094 = vld [vmem:[%s8 + $0x10] sm:$0xf]
      %v1095 = vld [vmem:[%s8 + $0x14] sm:$0xf]
      %v1096 = vld [vmem:[%s8 + $0x18] sm:$0xf]
      %v1097 = vld [vmem:[%s8 + $0x1c] sm:$0xf]
      %v1098 = vld [vmem:[%s9] sm:$0x1]
      %v1100 = vlaneseq
      %v1101 = vshrl.u32 %v1100, 7
      %v1102 = vsub.s32 0, %v1101
      %v1103 = vrot.slane %v1098, %v1102
      %v1113 = vunpack.c.l.b16 %v1090
      %v1114 = vunpack.c.l.b16 %v1091
      %v1115 = vunpack.c.l.b16 %v1092
      %v1116 = vunpack.c.l.b16 %v1093
      %v1117 = vunpack.c.l.b16 %v1094
      %v1118 = vunpack.c.l.b16 %v1095
      %v1119 = vunpack.c.l.b16 %v1096
      %v1120 = vunpack.c.l.b16 %v1097
      %v1121 = vpack.c.b16 %v1114, %v1113
      %v1122 = vpack.c.b16 %v1116, %v1115
      %v1123 = vpack.c.b16 %v1118, %v1117
      %v1124 = vpack.c.b16 %v1120, %v1119
      %v1130 = vsel %vm688, %v1082, 0
      %v1133 = vsel %vm688, %v1083, 0
      %v1136 = vsel %vm688, %v1084, 0
      %v1139 = vsel %vm688, %v1085, 0
      %v1142 = vsel %vm688, %v1086, 0
      %v1145 = vsel %vm688, %v1087, 0
      %v1148 = vsel %vm688, %v1088, 0
      %v1151 = vsel %vm688, %v1089, 0
      %1153 = vmatprep.subr.bf16.mxu0 0
      %1154 = vmatpush1.bf16.msra.mxu0 0
      %1155 = vmatprep.subr.bf16.mxu0 0
      %1156 = vmatpush1.bf16.msra.mxu0 0
      %1157 = vmatprep.subr.bf16.mxu0 0
      %1158 = vmatpush1.bf16.msra.mxu0 0
      %1159 = vmatprep.subr.bf16.mxu0 0
      %1160 = vmatpush1.bf16.msra.mxu0 0
      %1161 = vmatprep.subr.bf16.mxu0 0
      %1162 = vmatpush1.bf16.msra.mxu0 %v1124
      %1163 = vmatprep.subr.bf16.mxu0 0
      %1164 = vmatpush1.bf16.msra.mxu0 %v1123
      %1165 = vmatprep.subr.bf16.mxu0 0
      %1166 = vmatpush1.bf16.msra.mxu0 %v1122
      %1167 = vmatprep.subr.bf16.mxu0 0
      %1168 = vmatpush1.bf16.msra.mxu0 %v1121
      %1169 = vmatprep.subr.bf16.mxu0 0
      %1170 = vmatpush2.bf16.msra.mxu0 0
      %1171 = vmatprep.subr.bf16.mxu0 0
      %1172 = vmatpush2.bf16.msra.mxu0 0
      %1173 = vmatprep.subr.bf16.mxu0 0
      %1174 = vmatpush2.bf16.msra.mxu0 0
      %1175 = vmatprep.subr.bf16.mxu0 0
      %1176 = vmatpush2.bf16.msra.mxu0 0
      %1177 = vmatprep.subr.bf16.mxu0 0
      %1178 = vmatpush2.bf16.msra.mxu0 0
      %1179 = vmatprep.subr.bf16.mxu0 0
      %1180 = vmatpush2.bf16.msra.mxu0 0
      %1181 = vmatprep.subr.bf16.mxu0 0
      %1182 = vmatpush2.bf16.msra.mxu0 0
      %1183 = vmatprep.subr.bf16.mxu0 0
      %1184 = vmatpush2.bf16.msra.mxu0 0
      %1185 = vmatprep.mubr.bf16.mxu0 0
      %1186 = vmatmul.mubr.bf16.gmra.mxu0 %v1130
      %v1187 = vpop.f32.mrf.mxu0
      %v1188 = vadd.f32 %v1103, %v1187
      %v1189 = vpop.f32.mrf.mxu0
      %v1190 = vpop.f32.mrf.mxu0
      %v1191 = vadd.f32 %v1103, %v1190
      %v1192 = vpop.f32.mrf.mxu0
      %1193 = vmatprep.mubr.bf16.mxu0 0
      %1194 = vmatmul.mubr.bf16.gmra.mxu0 %v1133
      %v1195 = vpop.f32.mrf.mxu0
      %v1196 = vadd.f32 %v1103, %v1195
      %v1197 = vpop.f32.mrf.mxu0
      %v1198 = vpop.f32.mrf.mxu0
      %v1199 = vadd.f32 %v1103, %v1198
      %v1200 = vpop.f32.mrf.mxu0
      %1201 = vmatprep.mubr.bf16.mxu0 0
      %1202 = vmatmul.mubr.bf16.gmra.mxu0 %v1136
      %v1203 = vpop.f32.mrf.mxu0
      %v1204 = vadd.f32 %v1103, %v1203
      %v1205 = vpop.f32.mrf.mxu0
      %v1206 = vpop.f32.mrf.mxu0
      %v1207 = vadd.f32 %v1103, %v1206
      %v1208 = vpop.f32.mrf.mxu0
      %1209 = vmatprep.mubr.bf16.mxu0 0
      %1210 = vmatmul.mubr.bf16.gmra.mxu0 %v1139
      %v1211 = vpop.f32.mrf.mxu0
      %v1212 = vadd.f32 %v1103, %v1211
      %v1213 = vpop.f32.mrf.mxu0
      %v1214 = vpop.f32.mrf.mxu0
      %v1215 = vadd.f32 %v1103, %v1214
      %v1216 = vpop.f32.mrf.mxu0
      %1217 = vmatprep.mubr.bf16.mxu0 0
      %1218 = vmatmul.mubr.bf16.gmra.mxu0 %v1142
      %v1219 = vpop.f32.mrf.mxu0
      %v1220 = vadd.f32 %v1103, %v1219
      %v1221 = vpop.f32.mrf.mxu0
      %v1222 = vpop.f32.mrf.mxu0
      %v1223 = vadd.f32 %v1103, %v1222
      %v1224 = vpop.f32.mrf.mxu0
      %1225 = vmatprep.mubr.bf16.mxu0 0
      %1226 = vmatmul.mubr.bf16.gmra.mxu0 %v1145
      %v1227 = vpop.f32.mrf.mxu0
      %v1228 = vadd.f32 %v1103, %v1227
      %v1229 = vpop.f32.mrf.mxu0
      %v1230 = vpop.f32.mrf.mxu0
      %v1231 = vadd.f32 %v1103, %v1230
      %v1232 = vpop.f32.mrf.mxu0
      %1233 = vmatprep.mubr.bf16.mxu0 0
      %1234 = vmatmul.mubr.bf16.gmra.mxu0 %v1148
      %v1235 = vpop.f32.mrf.mxu0
      %v1236 = vadd.f32 %v1103, %v1235
      %v1237 = vpop.f32.mrf.mxu0
      %v1238 = vpop.f32.mrf.mxu0
      %v1239 = vadd.f32 %v1103, %v1238
      %v1240 = vpop.f32.mrf.mxu0
      %1241 = vmatprep.mubr.bf16.mxu0 0
      %1242 = vmatmul.mubr.bf16.gmra.mxu0 %v1151
      %v1243 = vpop.f32.mrf.mxu0
      %v1244 = vadd.f32 %v1103, %v1243
      %v1245 = vpop.f32.mrf.mxu0
      %v1246 = vpop.f32.mrf.mxu0
      %v1247 = vadd.f32 %v1103, %v1246
      %v1248 = vpop.f32.mrf.mxu0
      %1249 = vdwg.mxu0
      %v1250 = vmax.f32 %v1188, 0.0
      %v1251 = vmax.f32 %v1191, 0.0
      %v1252 = vmax.f32 %v1196, 0.0
      %v1253 = vmax.f32 %v1199, 0.0
      %v1254 = vmax.f32 %v1204, 0.0
      %v1255 = vmax.f32 %v1207, 0.0
      %v1256 = vmax.f32 %v1212, 0.0
      %v1257 = vmax.f32 %v1215, 0.0
      %v1258 = vmax.f32 %v1220, 0.0
      %v1259 = vmax.f32 %v1223, 0.0
      %v1260 = vmax.f32 %v1228, 0.0
      %v1261 = vmax.f32 %v1231, 0.0
      %v1262 = vmax.f32 %v1236, 0.0
      %v1263 = vmax.f32 %v1239, 0.0
      %v1264 = vmax.f32 %v1244, 0.0
      %v1265 = vmax.f32 %v1247, 0.0
      %v1266 = vld [vmem:[%s571] sm:$0xff]
      %v1267 = vld [vmem:[%s571 + $0x8] sm:$0xff]
      %v1268 = vld [vmem:[%s571 + $0x10] sm:$0xff]
      %v1269 = vld [vmem:[%s571 + $0x18] sm:$0xff]
      %v1270 = vld [vmem:[%s571 + $0x20] sm:$0xff]
      %v1271 = vld [vmem:[%s571 + $0x28] sm:$0xff]
      %v1272 = vld [vmem:[%s571 + $0x30] sm:$0xff]
      %v1273 = vld [vmem:[%s571 + $0x38] sm:$0xff]
      %v1274 = vld [vmem:[%s571 + $0x40] sm:$0xff]
      %v1275 = vld [vmem:[%s571 + $0x48] sm:$0xff]
      %v1276 = vld [vmem:[%s571 + $0x50] sm:$0xff]
      %v1277 = vld [vmem:[%s571 + $0x58] sm:$0xff]
      %v1278 = vld [vmem:[%s571 + $0x60] sm:$0xff]
      %v1279 = vld [vmem:[%s571 + $0x68] sm:$0xff]
      %v1280 = vld [vmem:[%s571 + $0x70] sm:$0xff]
      %v1281 = vld [vmem:[%s571 + $0x78] sm:$0xff]
      %v1282 = vpack.c.bf16 %v1267, %v1266
      %v1283 = vpack.c.bf16 %v1269, %v1268
      %v1284 = vpack.c.bf16 %v1271, %v1270
      %v1285 = vpack.c.bf16 %v1273, %v1272
      %v1286 = vpack.c.bf16 %v1275, %v1274
      %v1287 = vpack.c.bf16 %v1277, %v1276
      %v1288 = vpack.c.bf16 %v1279, %v1278
      %v1289 = vpack.c.bf16 %v1281, %v1280
      %v1290 = vpack.c.bf16 %v1251, %v1250
      %v1291 = vpack.c.bf16 %v1253, %v1252
      %v1292 = vpack.c.bf16 %v1255, %v1254
      %v1293 = vpack.c.bf16 %v1257, %v1256
      %v1294 = vpack.c.bf16 %v1259, %v1258
      %v1295 = vpack.c.bf16 %v1261, %v1260
      %v1296 = vpack.c.bf16 %v1263, %v1262
      %v1297 = vpack.c.bf16 %v1265, %v1264
      %1306 = vrot.lane.b32.xlu0 %v1290, 32
      %v1307 = vpop.permute.xlu0 %1306
      %1308 = vrot.lane.b32.xlu0 %v1291, 32
      %v1309 = vpop.permute.xlu0 %1308
      %1310 = vrot.lane.b32.xlu0 %v1292, 32
      %v1311 = vpop.permute.xlu0 %1310
      %1312 = vrot.lane.b32.xlu0 %v1293, 32
      %v1313 = vpop.permute.xlu0 %1312
      %1314 = vrot.lane.b32.xlu0 %v1294, 32
      %v1315 = vpop.permute.xlu0 %1314
      %1316 = vrot.lane.b32.xlu0 %v1295, 32
      %v1317 = vpop.permute.xlu0 %1316
      %1318 = vrot.lane.b32.xlu0 %v1296, 32
      %v1319 = vpop.permute.xlu0 %1318
      %1320 = vrot.lane.b32.xlu0 %v1297, 32
      %v1321 = vpop.permute.xlu0 %1320
      %v1324 = vsel %vm928, %v1282, %v1307
      %v1327 = vsel %vm928, %v1283, %v1309
      %v1330 = vsel %vm928, %v1284, %v1311
      %v1333 = vsel %vm928, %v1285, %v1313
      %v1336 = vsel %vm928, %v1286, %v1315
      %v1339 = vsel %vm928, %v1287, %v1317
      %v1342 = vsel %vm928, %v1288, %v1319
      %v1345 = vsel %vm928, %v1289, %v1321
      %v1346 = vld [vmem:[%s10] sm:$0xf]
      %v1347 = vld [vmem:[%s10 + $0x4] sm:$0xf]
      %v1348 = vld [vmem:[%s10 + $0x8] sm:$0xf]
      %v1349 = vld [vmem:[%s10 + $0xc] sm:$0xf]
      %v1350 = vld [vmem:[%s10 + $0x10] sm:$0xf]
      %v1351 = vld [vmem:[%s10 + $0x14] sm:$0xf]
      %v1352 = vld [vmem:[%s10 + $0x18] sm:$0xf]
      %v1353 = vld [vmem:[%s10 + $0x1c] sm:$0xf]
      %v1354 = vld [vmem:[%s11] sm:$0x1]
      %v1356 = vlaneseq
      %v1357 = vshrl.u32 %v1356, 7
      %v1358 = vsub.s32 0, %v1357
      %v1359 = vrot.slane %v1354, %v1358
      %v1369 = vunpack.c.l.b16 %v1346
      %v1370 = vunpack.c.l.b16 %v1347
      %v1371 = vunpack.c.l.b16 %v1348
      %v1372 = vunpack.c.l.b16 %v1349
      %v1373 = vunpack.c.l.b16 %v1350
      %v1374 = vunpack.c.l.b16 %v1351
      %v1375 = vunpack.c.l.b16 %v1352
      %v1376 = vunpack.c.l.b16 %v1353
      %v1377 = vpack.c.b16 %v1370, %v1369
      %v1378 = vpack.c.b16 %v1372, %v1371
      %v1379 = vpack.c.b16 %v1374, %v1373
      %v1380 = vpack.c.b16 %v1376, %v1375
      %v1385 = vsel %vm688, %v1324, 0
      %v1387 = vsel %vm688, %v1327, 0
      %v1389 = vsel %vm688, %v1330, 0
      %v1391 = vsel %vm688, %v1333, 0
      %v1393 = vsel %vm688, %v1336, 0
      %v1395 = vsel %vm688, %v1339, 0
      %v1397 = vsel %vm688, %v1342, 0
      %v1399 = vsel %vm688, %v1345, 0
      %1401 = vmatprep.subr.bf16.mxu0 0
      %1402 = vmatpush1.bf16.msra.mxu0 0
      %1403 = vmatprep.subr.bf16.mxu0 0
      %1404 = vmatpush1.bf16.msra.mxu0 0
      %1405 = vmatprep.subr.bf16.mxu0 0
      %1406 = vmatpush1.bf16.msra.mxu0 0
      %1407 = vmatprep.subr.bf16.mxu0 0
      %1408 = vmatpush1.bf16.msra.mxu0 0
      %1409 = vmatprep.subr.bf16.mxu0 0
      %1410 = vmatpush1.bf16.msra.mxu0 %v1380
      %1411 = vmatprep.subr.bf16.mxu0 0
      %1412 = vmatpush1.bf16.msra.mxu0 %v1379
      %1413 = vmatprep.subr.bf16.mxu0 0
      %1414 = vmatpush1.bf16.msra.mxu0 %v1378
      %1415 = vmatprep.subr.bf16.mxu0 0
      %1416 = vmatpush1.bf16.msra.mxu0 %v1377
      %1417 = vmatprep.subr.bf16.mxu0 0
      %1418 = vmatpush2.bf16.msra.mxu0 0
      %1419 = vmatprep.subr.bf16.mxu0 0
      %1420 = vmatpush2.bf16.msra.mxu0 0
      %1421 = vmatprep.subr.bf16.mxu0 0
      %1422 = vmatpush2.bf16.msra.mxu0 0
      %1423 = vmatprep.subr.bf16.mxu0 0
      %1424 = vmatpush2.bf16.msra.mxu0 0
      %1425 = vmatprep.subr.bf16.mxu0 0
      %1426 = vmatpush2.bf16.msra.mxu0 0
      %1427 = vmatprep.subr.bf16.mxu0 0
      %1428 = vmatpush2.bf16.msra.mxu0 0
      %1429 = vmatprep.subr.bf16.mxu0 0
      %1430 = vmatpush2.bf16.msra.mxu0 0
      %1431 = vmatprep.subr.bf16.mxu0 0
      %1432 = vmatpush2.bf16.msra.mxu0 0
      %1433 = vmatprep.mubr.bf16.mxu0 0
      %1434 = vmatmul.mubr.bf16.gmra.mxu0 %v1385
      %v1435 = vpop.f32.mrf.mxu0
      %v1436 = vadd.f32 %v1359, %v1435
      %v1437 = vpop.f32.mrf.mxu0
      %v1438 = vpop.f32.mrf.mxu0
      %v1439 = vadd.f32 %v1359, %v1438
      %v1440 = vpop.f32.mrf.mxu0
      %1441 = vmatprep.mubr.bf16.mxu0 0
      %1442 = vmatmul.mubr.bf16.gmra.mxu0 %v1387
      %v1443 = vpop.f32.mrf.mxu0
      %v1444 = vadd.f32 %v1359, %v1443
      %v1445 = vpop.f32.mrf.mxu0
      %v1446 = vpop.f32.mrf.mxu0
      %v1447 = vadd.f32 %v1359, %v1446
      %v1448 = vpop.f32.mrf.mxu0
      %1449 = vmatprep.mubr.bf16.mxu0 0
      %1450 = vmatmul.mubr.bf16.gmra.mxu0 %v1389
      %v1451 = vpop.f32.mrf.mxu0
      %v1452 = vadd.f32 %v1359, %v1451
      %v1453 = vpop.f32.mrf.mxu0
      %v1454 = vpop.f32.mrf.mxu0
      %v1455 = vadd.f32 %v1359, %v1454
      %v1456 = vpop.f32.mrf.mxu0
      %1457 = vmatprep.mubr.bf16.mxu0 0
      %1458 = vmatmul.mubr.bf16.gmra.mxu0 %v1391
      %v1459 = vpop.f32.mrf.mxu0
      %v1460 = vadd.f32 %v1359, %v1459
      %v1461 = vpop.f32.mrf.mxu0
      %v1462 = vpop.f32.mrf.mxu0
      %v1463 = vadd.f32 %v1359, %v1462
      %v1464 = vpop.f32.mrf.mxu0
      %1465 = vmatprep.mubr.bf16.mxu0 0
      %1466 = vmatmul.mubr.bf16.gmra.mxu0 %v1393
      %v1467 = vpop.f32.mrf.mxu0
      %v1468 = vadd.f32 %v1359, %v1467
      %v1469 = vpop.f32.mrf.mxu0
      %v1470 = vpop.f32.mrf.mxu0
      %v1471 = vadd.f32 %v1359, %v1470
      %v1472 = vpop.f32.mrf.mxu0
      %1473 = vmatprep.mubr.bf16.mxu0 0
      %1474 = vmatmul.mubr.bf16.gmra.mxu0 %v1395
      %v1475 = vpop.f32.mrf.mxu0
      %v1476 = vadd.f32 %v1359, %v1475
      %v1477 = vpop.f32.mrf.mxu0
      %v1478 = vpop.f32.mrf.mxu0
      %v1479 = vadd.f32 %v1359, %v1478
      %v1480 = vpop.f32.mrf.mxu0
      %1481 = vmatprep.mubr.bf16.mxu0 0
      %1482 = vmatmul.mubr.bf16.gmra.mxu0 %v1397
      %v1483 = vpop.f32.mrf.mxu0
      %v1484 = vadd.f32 %v1359, %v1483
      %v1485 = vpop.f32.mrf.mxu0
      %v1486 = vpop.f32.mrf.mxu0
      %v1487 = vadd.f32 %v1359, %v1486
      %v1488 = vpop.f32.mrf.mxu0
      %1489 = vmatprep.mubr.bf16.mxu0 0
      %1490 = vmatmul.mubr.bf16.gmra.mxu0 %v1399
      %v1491 = vpop.f32.mrf.mxu0
      %v1492 = vadd.f32 %v1359, %v1491
      %v1493 = vpop.f32.mrf.mxu0
      %v1494 = vpop.f32.mrf.mxu0
      %v1495 = vadd.f32 %v1359, %v1494
      %v1496 = vpop.f32.mrf.mxu0
      %1497 = vdwg.mxu0
      %v1498 = vmax.f32 %v1436, 0.0
      %v1499 = vmax.f32 %v1439, 0.0
      %v1500 = vmax.f32 %v1444, 0.0
      %v1501 = vmax.f32 %v1447, 0.0
      %v1502 = vmax.f32 %v1452, 0.0
      %v1503 = vmax.f32 %v1455, 0.0
      %v1504 = vmax.f32 %v1460, 0.0
      %v1505 = vmax.f32 %v1463, 0.0
      %v1506 = vmax.f32 %v1468, 0.0
      %v1507 = vmax.f32 %v1471, 0.0
      %v1508 = vmax.f32 %v1476, 0.0
      %v1509 = vmax.f32 %v1479, 0.0
      %v1510 = vmax.f32 %v1484, 0.0
      %v1511 = vmax.f32 %v1487, 0.0
      %v1512 = vmax.f32 %v1492, 0.0
      %v1513 = vmax.f32 %v1495, 0.0
      %v1514 = vld [vmem:[%s12] sm:$0xf]
      %v1515 = vld [vmem:[%s12 + $0x4] sm:$0xf]
      %v1516 = vld [vmem:[%s12 + $0x8] sm:$0xf]
      %v1517 = vld [vmem:[%s12 + $0xc] sm:$0xf]
      %v1518 = vld [vmem:[%s13] sm:$0x1]
      %v1520 = vlaneseq
      %v1521 = vshrl.u32 %v1520, 7
      %v1522 = vsub.s32 0, %v1521
      %v1523 = vrot.slane %v1518, %v1522
      %v1529 = vunpack.c.l.b16 %v1514
      %v1530 = vunpack.c.l.b16 %v1515
      %v1531 = vunpack.c.l.b16 %v1516
      %v1532 = vunpack.c.l.b16 %v1517
      %v1533 = vpack.c.b16 %v1530, %v1529
      %v1534 = vpack.c.b16 %v1532, %v1531
      %1537 = vmatprep.subr.bf16.mxu0 0
      %1538 = vmatpush1.bf16.msra.mxu0 0
      %1539 = vmatprep.subr.bf16.mxu0 0
      %1540 = vmatpush1.bf16.msra.mxu0 0
      %1541 = vmatprep.subr.bf16.mxu0 0
      %1542 = vmatpush1.bf16.msra.mxu0 0
      %1543 = vmatprep.subr.bf16.mxu0 0
      %1544 = vmatpush1.bf16.msra.mxu0 0
      %1545 = vmatprep.subr.bf16.mxu0 0
      %1546 = vmatpush1.bf16.msra.mxu0 0
      %1547 = vmatprep.subr.bf16.mxu0 0
      %1548 = vmatpush1.bf16.msra.mxu0 0
      %1549 = vmatprep.subr.bf16.mxu0 0
      %1550 = vmatpush1.bf16.msra.mxu0 %v1534
      %1551 = vmatprep.subr.bf16.mxu0 0
      %1552 = vmatpush1.bf16.msra.mxu0 %v1533
      %1553 = vmatprep.subr.bf16.mxu0 0
      %1554 = vmatpush2.bf16.msra.mxu0 0
      %1555 = vmatprep.subr.bf16.mxu0 0
      %1556 = vmatpush2.bf16.msra.mxu0 0
      %1557 = vmatprep.subr.bf16.mxu0 0
      %1558 = vmatpush2.bf16.msra.mxu0 0
      %1559 = vmatprep.subr.bf16.mxu0 0
      %1560 = vmatpush2.bf16.msra.mxu0 0
      %1561 = vmatprep.subr.bf16.mxu0 0
      %1562 = vmatpush2.bf16.msra.mxu0 0
      %1563 = vmatprep.subr.bf16.mxu0 0
      %1564 = vmatpush2.bf16.msra.mxu0 0
      %1565 = vmatprep.subr.bf16.mxu0 0
      %1566 = vmatpush2.bf16.msra.mxu0 0
      %1567 = vmatprep.subr.bf16.mxu0 0
      %1568 = vmatpush2.bf16.msra.mxu0 0
      %1569 = vmatprep.mubr.bf16.mxu0 0
      %1570 = vmatmul.mubr.bf16.gmra.mxu0 %v930
      %v1571 = vpop.f32.mrf.mxu0
      %v1572 = vadd.f32 %v1523, %v1571
      %v1573 = vpop.f32.mrf.mxu0
      %v1574 = vpop.f32.mrf.mxu0
      %v1575 = vadd.f32 %v1523, %v1574
      %v1576 = vpop.f32.mrf.mxu0
      %1577 = vmatprep.mubr.bf16.mxu0 0
      %1578 = vmatmul.mubr.bf16.gmra.mxu0 %v933
      %v1579 = vpop.f32.mrf.mxu0
      %v1580 = vadd.f32 %v1523, %v1579
      %v1581 = vpop.f32.mrf.mxu0
      %v1582 = vpop.f32.mrf.mxu0
      %v1583 = vadd.f32 %v1523, %v1582
      %v1584 = vpop.f32.mrf.mxu0
      %1585 = vmatprep.mubr.bf16.mxu0 0
      %1586 = vmatmul.mubr.bf16.gmra.mxu0 %v936
      %v1587 = vpop.f32.mrf.mxu0
      %v1588 = vadd.f32 %v1523, %v1587
      %v1589 = vpop.f32.mrf.mxu0
      %v1590 = vpop.f32.mrf.mxu0
      %v1591 = vadd.f32 %v1523, %v1590
      %v1592 = vpop.f32.mrf.mxu0
      %1593 = vmatprep.mubr.bf16.mxu0 0
      %1594 = vmatmul.mubr.bf16.gmra.mxu0 %v939
      %v1595 = vpop.f32.mrf.mxu0
      %v1596 = vadd.f32 %v1523, %v1595
      %v1597 = vpop.f32.mrf.mxu0
      %v1598 = vpop.f32.mrf.mxu0
      %v1599 = vadd.f32 %v1523, %v1598
      %v1600 = vpop.f32.mrf.mxu0
      %1601 = vmatprep.mubr.bf16.mxu0 0
      %1602 = vmatmul.mubr.bf16.gmra.mxu0 %v942
      %v1603 = vpop.f32.mrf.mxu0
      %v1604 = vadd.f32 %v1523, %v1603
      %v1605 = vpop.f32.mrf.mxu0
      %v1606 = vpop.f32.mrf.mxu0
      %v1607 = vadd.f32 %v1523, %v1606
      %v1608 = vpop.f32.mrf.mxu0
      %1609 = vmatprep.mubr.bf16.mxu0 0
      %1610 = vmatmul.mubr.bf16.gmra.mxu0 %v945
      %v1611 = vpop.f32.mrf.mxu0
      %v1612 = vadd.f32 %v1523, %v1611
      %v1613 = vpop.f32.mrf.mxu0
      %v1614 = vpop.f32.mrf.mxu0
      %v1615 = vadd.f32 %v1523, %v1614
      %v1616 = vpop.f32.mrf.mxu0
      %1617 = vmatprep.mubr.bf16.mxu0 0
      %1618 = vmatmul.mubr.bf16.gmra.mxu0 %v948
      %v1619 = vpop.f32.mrf.mxu0
      %v1620 = vadd.f32 %v1523, %v1619
      %v1621 = vpop.f32.mrf.mxu0
      %v1622 = vpop.f32.mrf.mxu0
      %v1623 = vadd.f32 %v1523, %v1622
      %v1624 = vpop.f32.mrf.mxu0
      %1625 = vmatprep.mubr.bf16.mxu0 0
      %1626 = vmatmul.mubr.bf16.gmra.mxu0 %v951
      %v1627 = vpop.f32.mrf.mxu0
      %v1628 = vadd.f32 %v1523, %v1627
      %v1629 = vpop.f32.mrf.mxu0
      %v1630 = vpop.f32.mrf.mxu0
      %v1631 = vadd.f32 %v1523, %v1630
      %v1632 = vpop.f32.mrf.mxu0
      %1633 = vdwg.mxu0
      %v1634 = vmax.f32 %v1572, 0.0
      %v1635 = vmax.f32 %v1575, 0.0
      %v1636 = vmax.f32 %v1580, 0.0
      %v1637 = vmax.f32 %v1583, 0.0
      %v1638 = vmax.f32 %v1588, 0.0
      %v1639 = vmax.f32 %v1591, 0.0
      %v1640 = vmax.f32 %v1596, 0.0
      %v1641 = vmax.f32 %v1599, 0.0
      %v1642 = vmax.f32 %v1604, 0.0
      %v1643 = vmax.f32 %v1607, 0.0
      %v1644 = vmax.f32 %v1612, 0.0
      %v1645 = vmax.f32 %v1615, 0.0
      %v1646 = vmax.f32 %v1620, 0.0
      %v1647 = vmax.f32 %v1623, 0.0
      %v1648 = vmax.f32 %v1628, 0.0
      %v1649 = vmax.f32 %v1631, 0.0
      %v1650 = vadd.f32 %v1498, %v1634
      %v1651 = vadd.f32 %v1499, %v1635
      %v1652 = vadd.f32 %v1500, %v1636
      %v1653 = vadd.f32 %v1501, %v1637
      %v1654 = vadd.f32 %v1502, %v1638
      %v1655 = vadd.f32 %v1503, %v1639
      %v1656 = vadd.f32 %v1504, %v1640
      %v1657 = vadd.f32 %v1505, %v1641
      %v1658 = vadd.f32 %v1506, %v1642
      %v1659 = vadd.f32 %v1507, %v1643
      %v1660 = vadd.f32 %v1508, %v1644
      %v1661 = vadd.f32 %v1509, %v1645
      %v1662 = vadd.f32 %v1510, %v1646
      %v1663 = vadd.f32 %v1511, %v1647
      %v1664 = vadd.f32 %v1512, %v1648
      %v1665 = vadd.f32 %v1513, %v1649
      %v1666 = vpack.c.bf16 %v1651, %v1650
      %v1667 = vpack.c.bf16 %v1653, %v1652
      %v1668 = vpack.c.bf16 %v1655, %v1654
      %v1669 = vpack.c.bf16 %v1657, %v1656
      %v1670 = vpack.c.bf16 %v1659, %v1658
      %v1671 = vpack.c.bf16 %v1661, %v1660
      %v1672 = vpack.c.bf16 %v1663, %v1662
      %v1673 = vpack.c.bf16 %v1665, %v1664
      %v1674 = vld [vmem:[%s14] sm:$0xf]
      %v1675 = vld [vmem:[%s14 + $0x4] sm:$0xf]
      %v1676 = vld [vmem:[%s14 + $0x8] sm:$0xf]
      %v1677 = vld [vmem:[%s14 + $0xc] sm:$0xf]
      %v1678 = vld [vmem:[%s15] sm:$0x1]
      %v1680 = vlaneseq
      %v1681 = vshrl.u32 %v1680, 7
      %v1682 = vsub.s32 0, %v1681
      %v1683 = vrot.slane %v1678, %v1682
      %v1689 = vunpack.c.l.b16 %v1674
      %v1690 = vunpack.c.l.b16 %v1675
      %v1691 = vunpack.c.l.b16 %v1676
      %v1692 = vunpack.c.l.b16 %v1677
      %v1693 = vpack.c.b16 %v1690, %v1689
      %v1694 = vpack.c.b16 %v1692, %v1691
      %v1698 = vsel %vm928, %v1666, 0
      %v1701 = vsel %vm928, %v1667, 0
      %v1704 = vsel %vm928, %v1668, 0
      %v1707 = vsel %vm928, %v1669, 0
      %v1710 = vsel %vm928, %v1670, 0
      %v1713 = vsel %vm928, %v1671, 0
      %v1716 = vsel %vm928, %v1672, 0
      %v1719 = vsel %vm928, %v1673, 0
      %1721 = vmatprep.subr.bf16.mxu0 0
      %1722 = vmatpush1.bf16.msra.mxu0 0
      %1723 = vmatprep.subr.bf16.mxu0 0
      %1724 = vmatpush1.bf16.msra.mxu0 0
      %1725 = vmatprep.subr.bf16.mxu0 0
      %1726 = vmatpush1.bf16.msra.mxu0 0
      %1727 = vmatprep.subr.bf16.mxu0 0
      %1728 = vmatpush1.bf16.msra.mxu0 0
      %1729 = vmatprep.subr.bf16.mxu0 0
      %1730 = vmatpush1.bf16.msra.mxu0 0
      %1731 = vmatprep.subr.bf16.mxu0 0
      %1732 = vmatpush1.bf16.msra.mxu0 0
      %1733 = vmatprep.subr.bf16.mxu0 0
      %1734 = vmatpush1.bf16.msra.mxu0 %v1694
      %1735 = vmatprep.subr.bf16.mxu0 0
      %1736 = vmatpush1.bf16.msra.mxu0 %v1693
      %1737 = vmatprep.subr.bf16.mxu0 0
      %1738 = vmatpush2.bf16.msra.mxu0 0
      %1739 = vmatprep.subr.bf16.mxu0 0
      %1740 = vmatpush2.bf16.msra.mxu0 0
      %1741 = vmatprep.subr.bf16.mxu0 0
      %1742 = vmatpush2.bf16.msra.mxu0 0
      %1743 = vmatprep.subr.bf16.mxu0 0
      %1744 = vmatpush2.bf16.msra.mxu0 0
      %1745 = vmatprep.subr.bf16.mxu0 0
      %1746 = vmatpush2.bf16.msra.mxu0 0
      %1747 = vmatprep.subr.bf16.mxu0 0
      %1748 = vmatpush2.bf16.msra.mxu0 0
      %1749 = vmatprep.subr.bf16.mxu0 0
      %1750 = vmatpush2.bf16.msra.mxu0 0
      %1751 = vmatprep.subr.bf16.mxu0 0
      %1752 = vmatpush2.bf16.msra.mxu0 0
      %1753 = vmatprep.mubr.bf16.mxu0 0
      %1754 = vmatmul.mubr.bf16.gmra.mxu0 %v1698
      %v1755 = vpop.f32.mrf.mxu0
      %v1756 = vadd.f32 %v1683, %v1755
      %v1757 = vpop.f32.mrf.mxu0
      %v1758 = vpop.f32.mrf.mxu0
      %v1759 = vadd.f32 %v1683, %v1758
      %v1760 = vpop.f32.mrf.mxu0
      %1761 = vmatprep.mubr.bf16.mxu0 0
      %1762 = vmatmul.mubr.bf16.gmra.mxu0 %v1701
      %v1763 = vpop.f32.mrf.mxu0
      %v1764 = vadd.f32 %v1683, %v1763
      %v1765 = vpop.f32.mrf.mxu0
      %v1766 = vpop.f32.mrf.mxu0
      %v1767 = vadd.f32 %v1683, %v1766
      %v1768 = vpop.f32.mrf.mxu0
      %1769 = vmatprep.mubr.bf16.mxu0 0
      %1770 = vmatmul.mubr.bf16.gmra.mxu0 %v1704
      %v1771 = vpop.f32.mrf.mxu0
      %v1772 = vadd.f32 %v1683, %v1771
      %v1773 = vpop.f32.mrf.mxu0
      %v1774 = vpop.f32.mrf.mxu0
      %v1775 = vadd.f32 %v1683, %v1774
      %v1776 = vpop.f32.mrf.mxu0
      %1777 = vmatprep.mubr.bf16.mxu0 0
      %1778 = vmatmul.mubr.bf16.gmra.mxu0 %v1707
      %v1779 = vpop.f32.mrf.mxu0
      %v1780 = vadd.f32 %v1683, %v1779
      %v1781 = vpop.f32.mrf.mxu0
      %v1782 = vpop.f32.mrf.mxu0
      %v1783 = vadd.f32 %v1683, %v1782
      %v1784 = vpop.f32.mrf.mxu0
      %1785 = vmatprep.mubr.bf16.mxu0 0
      %1786 = vmatmul.mubr.bf16.gmra.mxu0 %v1710
      %v1787 = vpop.f32.mrf.mxu0
      %v1788 = vadd.f32 %v1683, %v1787
      %v1789 = vpop.f32.mrf.mxu0
      %v1790 = vpop.f32.mrf.mxu0
      %v1791 = vadd.f32 %v1683, %v1790
      %v1792 = vpop.f32.mrf.mxu0
      %1793 = vmatprep.mubr.bf16.mxu0 0
      %1794 = vmatmul.mubr.bf16.gmra.mxu0 %v1713
      %v1795 = vpop.f32.mrf.mxu0
      %v1796 = vadd.f32 %v1683, %v1795
      %v1797 = vpop.f32.mrf.mxu0
      %v1798 = vpop.f32.mrf.mxu0
      %v1799 = vadd.f32 %v1683, %v1798
      %v1800 = vpop.f32.mrf.mxu0
      %1801 = vmatprep.mubr.bf16.mxu0 0
      %1802 = vmatmul.mubr.bf16.gmra.mxu0 %v1716
      %v1803 = vpop.f32.mrf.mxu0
      %v1804 = vadd.f32 %v1683, %v1803
      %v1805 = vpop.f32.mrf.mxu0
      %v1806 = vpop.f32.mrf.mxu0
      %v1807 = vadd.f32 %v1683, %v1806
      %v1808 = vpop.f32.mrf.mxu0
      %1809 = vmatprep.mubr.bf16.mxu0 0
      %1810 = vmatmul.mubr.bf16.gmra.mxu0 %v1719
      %v1811 = vpop.f32.mrf.mxu0
      %v1812 = vadd.f32 %v1683, %v1811
      %v1813 = vpop.f32.mrf.mxu0
      %v1814 = vpop.f32.mrf.mxu0
      %v1815 = vadd.f32 %v1683, %v1814
      %v1816 = vpop.f32.mrf.mxu0
      %1817 = vdwg.mxu0
      %v1818 = vmax.f32 %v1756, 0.0
      %v1819 = vmax.f32 %v1759, 0.0
      %v1820 = vmax.f32 %v1764, 0.0
      %v1821 = vmax.f32 %v1767, 0.0
      %v1822 = vmax.f32 %v1772, 0.0
      %v1823 = vmax.f32 %v1775, 0.0
      %v1824 = vmax.f32 %v1780, 0.0
      %v1825 = vmax.f32 %v1783, 0.0
      %v1826 = vmax.f32 %v1788, 0.0
      %v1827 = vmax.f32 %v1791, 0.0
      %v1828 = vmax.f32 %v1796, 0.0
      %v1829 = vmax.f32 %v1799, 0.0
      %v1830 = vmax.f32 %v1804, 0.0
      %v1831 = vmax.f32 %v1807, 0.0
      %v1832 = vmax.f32 %v1812, 0.0
      %v1833 = vmax.f32 %v1815, 0.0
      %vm1834 = vcmask 130048
      %1835 = vst.msk [vmem:[%s589] sm:$0xff] %vm1834, %v1818
      %1836 = vst.msk [vmem:[%s589 + $0x8] sm:$0xff] %vm1834, %v1819
      %1837 = vst.msk [vmem:[%s589 + $0x10] sm:$0xff] %vm1834, %v1820
      %1838 = vst.msk [vmem:[%s589 + $0x18] sm:$0xff] %vm1834, %v1821
      %1839 = vst.msk [vmem:[%s589 + $0x20] sm:$0xff] %vm1834, %v1822
      %1840 = vst.msk [vmem:[%s589 + $0x28] sm:$0xff] %vm1834, %v1823
      %1841 = vst.msk [vmem:[%s589 + $0x30] sm:$0xff] %vm1834, %v1824
      %1842 = vst.msk [vmem:[%s589 + $0x38] sm:$0xff] %vm1834, %v1825
      %1843 = vst.msk [vmem:[%s589 + $0x40] sm:$0xff] %vm1834, %v1826
      %1844 = vst.msk [vmem:[%s589 + $0x48] sm:$0xff] %vm1834, %v1827
      %1845 = vst.msk [vmem:[%s589 + $0x50] sm:$0xff] %vm1834, %v1828
      %1846 = vst.msk [vmem:[%s589 + $0x58] sm:$0xff] %vm1834, %v1829
      %1847 = vst.msk [vmem:[%s589 + $0x60] sm:$0xff] %vm1834, %v1830
      %1848 = vst.msk [vmem:[%s589 + $0x68] sm:$0xff] %vm1834, %v1831
      %1849 = vst.msk [vmem:[%s589 + $0x70] sm:$0xff] %vm1834, %v1832
      %1850 = vst.msk [vmem:[%s589 + $0x78] sm:$0xff] %vm1834, %v1833
      %s1851 = smul.u32 16, %s27
      %p1852 = scmp.lt.s32.totalorder %s1851, 31
      %s1853 = scalar_select %p1852, %s1851, 31
      %s1854 = smul.addr %s1853, 8
      %s1855 = scalar_lea.vmem %s16, %s1854
      // Predicated region
      $region85: #{decoder_forward.1} parent=83 // pred_check
        %p1856 = pneg %p401
      $region86: #{decoder_forward.1} parent=83 // pred_check_branch
        %1858 = sbr.rel (%p1856) target = $region88
      $region87: #{decoder_forward.1} parent=83 // pred_region
        %s1859 = smul.u32 16, %s27
      $region88: #{decoder_forward.1} parent=83 // pred_fallthru
        _
    $region84: #{decoder_forward.1} parent=5 // pred_fallthru
      _
    %p1860 = scmp.le.s32.totalorder 2, %s22
    // Predicated region
    $region89: #{decoder_forward.1} parent=5 // pred_check
      %p1861 = pneg %p1860
    $region90: #{decoder_forward.1} parent=5 // pred_check_branch
      %1863 = sbr.rel (%p1861) target = $region92
    $region91: #{decoder_forward.1} parent=5 // pred_region
      %s1864 = ssub.s32 %s22, 2
      // Predicated region
      $region93: #{decoder_forward.1} parent=91 // pred_check
        %p1865 = pneg %p407
      $region94: #{decoder_forward.1} parent=91 // pred_check_branch
        %1867 = sbr.rel (%p1865) target = $region96
      $region95: #{decoder_forward.1} parent=91 // pred_region
        %s1868 = smul.u32 16, %s28
        %p1869 = scmp.lt.s32.totalorder %s1868, 31
        %s1870 = scalar_select %p1869, %s1868, 31
        %s1871 = smul.addr %s1870, 8
        %s1872 = scalar_lea.vmem %s16, %s1871
      $region96: #{decoder_forward.1} parent=91 // pred_fallthru
        _
    $region92: #{decoder_forward.1} parent=5 // pred_fallthru
      _
  $region6: #{decoder_forward.1} parent=0 // loop_footer
    %s26 = sadd.s32 1, %s22
  $region7: #{decoder_forward.1} parent=0 // loop_footer_branch
    %21 = sbr.rel target = $region3
  $region8: #{decoder_forward.1} parent=0 // loop_exit
    _

</llo_original>
